<compile_context>
chip_gen: v7x
topology: tpu7x:2x2x1
jax: 0.10.0
libtpu: 0.0.40
codegen_flags: <defaults>
</compile_context>

<pallas_src>
import functools
import jax
import jax.numpy as jnp
from jax.experimental import pallas as pl
from jax.experimental.pallas import tpu as pltpu

MXU_DTYPE = jnp.bfloat16


def encoder_layer_kernel(
    x_ref,                         # (Bb, L, E)    f32  (consumed at layer 0 only)
    pos_ref,                       # (1, E)        f32  positional parameter
    wqkv_ref,                      # (1, Dh, 3Dh)  bf16 fused/shared QKV (scale folded into Q)
    wo_ref,                        # (1, E, E)     bf16 fc_out weight (pre-transposed)
    bo_ref,                        # (1, 1, E)     f32
    g1_ref, be1_ref,               # (1, 1, E)     f32  LayerNorm 1
    w1_ref,                        # (1, E, Hf)    bf16 (pre-transposed)
    bf1_ref,                       # (1, 1, Hf)    f32
    w2_ref,                        # (1, Hf, E)    bf16 (pre-transposed)
    bf2_ref,                       # (1, 1, E)     f32
    g2_ref, be2_ref,               # (1, 1, E)     f32  LayerNorm 2
    o_ref,                         # (Bb, L, E)    f32  activation carry across the layer axis
    *, heads, head_dim, ff_chunk, eps=1e-5,
):
    Bb, L, E = x_ref.shape
    H, Dh = heads, head_dim
    BL = Bb * L
    layer = pl.program_id(1)

    # ---- layer 0: seed the carry.  Dropout == identity (eval mode). --------
    @pl.when(layer == 0)
    def _init():
        o_ref[...] = x_ref[...] + pos_ref[...]        # (1,E) param broadcasts

    xf = o_ref[...].reshape(BL, E)                    # f32 layer-to-layer carry

    def layernorm(v, g, b):                           # statistics in f32
        mu = jnp.mean(v, axis=-1, keepdims=True)
        var = jnp.mean((v - mu) ** 2, axis=-1, keepdims=True)
        return (v - mu) * jax.lax.rsqrt(var + eps) * g + b

    # ---- self attention (value = key = query = current activation) ---------
    x3 = xf.reshape(Bb, L, E)
    # Fold heads into the leading batch axis ONCE: (H*Bb, L, Dh), z = h*Bb + b.
    x_hb = jnp.concatenate(
        [x3[:, :, h * Dh:(h + 1) * Dh] for h in range(H)], axis=0)
    # Single fused QKV matmul (weights shared across heads per the module).
    qkv = jnp.dot(x_hb.reshape(H * BL, Dh).astype(MXU_DTYPE), wqkv_ref[0],
                  preferred_element_type=jnp.float32).reshape(H * Bb, L, 3 * Dh)
    q = qkv[:, :, 0 * Dh:1 * Dh].astype(MXU_DTYPE)    # scale already folded in
    k = qkv[:, :, 1 * Dh:2 * Dh].astype(MXU_DTYPE)
    v = qkv[:, :, 2 * Dh:3 * Dh].astype(MXU_DTYPE)

    e = jnp.einsum("zqd,zkd->zqk", q, k, preferred_element_type=jnp.float32)
    # TODO(synk): mask handling skipped — Encoder is exercised with mask=None.
    e = e - jnp.max(e, axis=-1, keepdims=True)
    p = jnp.exp(e)
    a = p * pl.reciprocal(jnp.sum(p, axis=-1, keepdims=True), approx=True)
    o_hb = jnp.einsum("zqk,zkd->zqd", a.astype(MXU_DTYPE), v,
                      preferred_element_type=jnp.float32)     # (H*Bb, L, Dh)

    # Heads back to a lane-dense (BL, E) slab, then one full-width fc_out dot.
    attn = jnp.concatenate(
        [o_hb[h * Bb:(h + 1) * Bb] for h in range(H)], axis=-1).reshape(BL, E)
    attn_out = jnp.dot(attn.astype(MXU_DTYPE), wo_ref[0],
                       preferred_element_type=jnp.float32) + bo_ref[0]

    x1 = layernorm(attn_out + xf, g1_ref[0], be1_ref[0])

    # ---- feed forward, chunked over the hidden dim --------------------------
    x1b = x1.astype(MXU_DTYPE)
    Hf = w1_ref.shape[-1]
    ff = jnp.zeros((BL, E), jnp.float32)
    for c in range(Hf // ff_chunk):                    # static; bounds (BL, Hf) live
        sl = slice(c * ff_chunk, (c + 1) * ff_chunk)
        h1 = jnp.maximum(
            jnp.dot(x1b, w1_ref[0, :, sl], preferred_element_type=jnp.float32)
            + bf1_ref[0, :, sl], 0.0)
        ff = ff + jnp.dot(h1.astype(MXU_DTYPE), w2_ref[0, sl, :],
                          preferred_element_type=jnp.float32)
    ff = ff + bf2_ref[0]

    x2 = layernorm(ff + x1, g2_ref[0], be2_ref[0])
    o_ref[...] = x2.reshape(Bb, L, E).astype(o_ref.dtype)


def encoder_forward(x, pos_emb, layers, heads, *, batch_block=None, ff_chunk=None):
    """Whole encoder stack in one pallas_call with a pipelined layer grid axis.

    batch_block=None -> whole batch per step (single-TC v5e/v6e).  On v7x pass
    batch_block=B//2 only if (B//2)*L stays >= 256 (keep the MXU fed).
    """
    B, L, E = x.shape
    NL = len(layers)
    assert E % heads == 0
    Dh = E // heads
    Hf = layers[0]["w1"].shape[0]
    bb = B if batch_block is None else batch_block
    assert B % bb == 0
    if ff_chunk is None:
        ff_chunk = Hf if (Hf <= 512 or Hf % 512) else 512
    assert Hf % ff_chunk == 0

    scale = 1.0 / (E ** 0.5)      # torch: softmax(energy / embed_size ** 0.5)

    # Stack per-layer weights once (plain XLA, outside the kernel).
    # MXU operands -> bf16; biases / LayerNorm params stay f32.
    wqkv = jnp.stack([
        jnp.concatenate([p["wq"].T * scale, p["wk"].T, p["wv"].T], axis=1)
        for p in layers]).astype(MXU_DTYPE)                          # (NL, Dh, 3Dh)
    wo_t = jnp.stack([p["wo"].T for p in layers]).astype(MXU_DTYPE)  # (NL, E, E)
    w1_t = jnp.stack([p["w1"].T for p in layers]).astype(MXU_DTYPE)  # (NL, E, Hf)
    w2_t = jnp.stack([p["w2"].T for p in layers]).astype(MXU_DTYPE)  # (NL, Hf, E)
    bo = jnp.stack([p["bo"] for p in layers])                        # (NL, 1, E)
    g1 = jnp.stack([p["g1"] for p in layers])
    be1 = jnp.stack([p["be1"] for p in layers])
    bf1 = jnp.stack([p["bf1"] for p in layers])                      # (NL, 1, Hf)
    bf2 = jnp.stack([p["bf2"] for p in layers])
    g2 = jnp.stack([p["g2"] for p in layers])
    be2 = jnp.stack([p["be2"] for p in layers])

    weights = [wqkv, wo_t, bo, g1, be1, w1_t, bf1, w2_t, bf2, g2, be2]

    def layer_spec(a):            # per-layer tile, indexed by the layer grid axis
        zeros = (0,) * (a.ndim - 1)
        return pl.BlockSpec((1,) + a.shape[1:], lambda b, l: (l,) + zeros)

    # VMEM budget: ~2 resident layers of weights (double-buffered prefetch on
    # the layer axis) + activations/attention intermediates + headroom.
    per_layer_bytes = sum(int(a.size) * a.dtype.itemsize for a in weights) // NL
    act_bytes = bb * L * max(E, ff_chunk, heads * L) * 4
    vmem_limit = int(min(120 * 2 ** 20,
                         max(32 * 2 ** 20,
                             3 * per_layer_bytes + 24 * act_bytes + (4 << 20))))

    kernel = functools.partial(encoder_layer_kernel, heads=heads, head_dim=Dh,
                               ff_chunk=ff_chunk)
    return pl.pallas_call(
        kernel,
        out_shape=jax.ShapeDtypeStruct((B, L, E), x.dtype),
        grid=(B // bb, NL),
        in_specs=[
            pl.BlockSpec((bb, L, E), lambda b, l: (b, 0, 0)),   # x (used at l==0)
            pl.BlockSpec((1, E), lambda b, l: (0, 0)),          # positional param
        ] + [layer_spec(a) for a in weights],
        # Constant block index across the layer axis => VMEM-resident carry.
        out_specs=pl.BlockSpec((bb, L, E), lambda b, l: (b, 0, 0)),
        compiler_params=pltpu.CompilerParams(
            dimension_semantics=("parallel", "arbitrary"),
            vmem_limit_bytes=vmem_limit),
    )(x, pos_emb, *weights)


# ---------------- parameter init (deterministic, torch-Linear-like) ----------

def _init_linear(key, out_f, in_f):
    k1, k2 = jax.random.split(key)
    bound = 1.0 / (in_f ** 0.5)
    w = jax.random.uniform(k1, (out_f, in_f), jnp.float32, -bound, bound)
    b = jax.random.uniform(k2, (1, out_f), jnp.float32, -bound, bound)
    return w, b


def init_encoder_params(key, embed_size, num_layers, heads, forward_expansion):
    head_dim = embed_size // heads
    hidden = forward_expansion * embed_size
    keys = jax.random.split(key, num_layers + 1)
    pos_emb = jax.random.normal(keys[0], (1, embed_size), jnp.float32)
    layers = []
    for li in range(num_layers):
        ks = jax.random.split(keys[li + 1], 6)
        wq, _ = _init_linear(ks[0], head_dim, head_dim)   # bias=False in torch
        wk, _ = _init_linear(ks[1], head_dim, head_dim)
        wv, _ = _init_linear(ks[2], head_dim, head_dim)
        wo, bo = _init_linear(ks[3], embed_size, embed_size)
        w1, bf1 = _init_linear(ks[4], hidden, embed_size)
        w2, bf2 = _init_linear(ks[5], embed_size, hidden)
        layers.append(dict(
            wq=wq, wk=wk, wv=wv, wo=wo, bo=bo,
            g1=jnp.ones((1, embed_size), jnp.float32),
            be1=jnp.zeros((1, embed_size), jnp.float32),
            w1=w1, bf1=bf1, w2=w2, bf2=bf2,
            g2=jnp.ones((1, embed_size), jnp.float32),
            be2=jnp.zeros((1, embed_size), jnp.float32),
        ))
    return pos_emb, layers


# ---------------- pure-JAX f32 reference (module semantics) ------------------

def _ref_block(x, p, heads):
    B, L, E = x.shape
    Dh = E // heads
    xh = x.reshape(B, L, heads, Dh)
    q = xh @ p["wq"].T
    k = xh @ p["wk"].T
    v = xh @ p["wv"].T
    e = jnp.einsum("nqhd,nkhd->nhqk", q, k) / (E ** 0.5)
    a = jax.nn.softmax(e, axis=-1)
    o = jnp.einsum("nhql,nlhd->nqhd", a, v).reshape(B, L, E)
    attn = o @ p["wo"].T + p["bo"][0]

    def ln(v_, g, b):
        mu = v_.mean(-1, keepdims=True)
        var = ((v_ - mu) ** 2).mean(-1, keepdims=True)
        return (v_ - mu) / jnp.sqrt(var + 1e-5) * g[0] + b[0]

    x1 = ln(attn + x, p["g1"], p["be1"])
    ff = jnp.maximum(x1 @ p["w1"].T + p["bf1"][0], 0.0) @ p["w2"].T + p["bf2"][0]
    return ln(ff + x1, p["g2"], p["be2"])


def _ref_encoder(x, pos_emb, layers, heads):
    out = x + pos_emb
    for p in layers:
        out = _ref_block(out, p, heads)
    return out


if __name__ == "__main__":
    B, L, E = 2, 8, 32
    heads, num_layers, forward_expansion = 4, 2, 4

    key = jax.random.PRNGKey(0)
    kx, kp = jax.random.split(key)
    # x is the (already-embedded) float input of shape (B, L, E)
    x = jax.random.normal(kx, (B, L, E), jnp.float32)
    pos_emb, layers = init_encoder_params(kp, E, num_layers, heads, forward_expansion)

    out = jax.block_until_ready(encoder_forward(x, pos_emb, layers, heads))
    ref = jax.block_until_ready(_ref_encoder(x, pos_emb, layers, heads))

    assert out.shape == (B, L, E)
    # bf16 MXU operands + EUP approx-reciprocal softmax => a few 1e-3 of noise
    # vs the pure-f32 reference; structural bugs would be O(1).
    assert jnp.allclose(out, ref, atol=3e-2, rtol=3e-2), (
        "mismatch vs reference (max abs err "
        f"{float(jnp.max(jnp.abs(out - ref))):.4e})")
    print("KERNEL_OK")
</pallas_src>

<mosaic_0001>
module attributes {stable_mosaic.version = 11 : i64} {
  func.func @encoder_layer_kernel(%arg0: i32, %arg1: i32, %arg2: memref<2x8x32xf32, #tpu.memory_space<vmem>>, %arg3: memref<1x32xf32, #tpu.memory_space<vmem>>, %arg4: memref<1x8x24xbf16, #tpu.memory_space<vmem>>, %arg5: memref<1x32x32xbf16, #tpu.memory_space<vmem>>, %arg6: memref<1x1x32xf32, #tpu.memory_space<vmem>>, %arg7: memref<1x1x32xf32, #tpu.memory_space<vmem>>, %arg8: memref<1x1x32xf32, #tpu.memory_space<vmem>>, %arg9: memref<1x32x128xbf16, #tpu.memory_space<vmem>>, %arg10: memref<1x1x128xf32, #tpu.memory_space<vmem>>, %arg11: memref<1x128x32xbf16, #tpu.memory_space<vmem>>, %arg12: memref<1x1x32xf32, #tpu.memory_space<vmem>>, %arg13: memref<1x1x32xf32, #tpu.memory_space<vmem>>, %arg14: memref<1x1x32xf32, #tpu.memory_space<vmem>>, %arg15: memref<2x8x32xf32, #tpu.memory_space<vmem>>) attributes {dimension_semantics = [#tpu.dimension_semantics<parallel>, #tpu.dimension_semantics<arbitrary>], iteration_bounds = array<i64: 1, 2>, scalar_prefetch = 0 : i64, scratch_operands = 0 : i64, tpu.core_type = #tpu.core_type<tc>, window_params = [{transform_indices = @transform_0, window_bounds = array<i64: 2, 8, 32>}, {pipeline_mode = #tpu.pipeline_mode<synchronous>, transform_indices = @transform_1, window_bounds = array<i64: 1, 32>}, {transform_indices = @transform_2, window_bounds = array<i64: 1, 8, 24>}, {transform_indices = @transform_3, window_bounds = array<i64: 1, 32, 32>}, {transform_indices = @transform_4, window_bounds = array<i64: 1, 1, 32>}, {transform_indices = @transform_5, window_bounds = array<i64: 1, 1, 32>}, {transform_indices = @transform_6, window_bounds = array<i64: 1, 1, 32>}, {transform_indices = @transform_7, window_bounds = array<i64: 1, 32, 128>}, {transform_indices = @transform_8, window_bounds = array<i64: 1, 1, 128>}, {transform_indices = @transform_9, window_bounds = array<i64: 1, 128, 32>}, {transform_indices = @transform_10, window_bounds = array<i64: 1, 1, 32>}, {transform_indices = @transform_11, window_bounds = array<i64: 1, 1, 32>}, {transform_indices = @transform_12, window_bounds = array<i64: 1, 1, 32>}, {transform_indices = @transform_13, window_bounds = array<i64: 2, 8, 32>}]} {
    %c0_i32 = arith.constant 0 : i32
    %0 = arith.cmpi eq, %arg1, %c0_i32 : i32
    %1 = arith.extui %0 : i1 to i32
    %c0_i32_0 = arith.constant 0 : i32
    %2 = arith.cmpi ne, %1, %c0_i32_0 : i32
    scf.if %2 {
      %c0_58 = arith.constant 0 : index
      %c0_59 = arith.constant 0 : index
      %c0_60 = arith.constant 0 : index
      %126 = vector.load %arg2[%c0_58, %c0_59, %c0_60] : memref<2x8x32xf32, #tpu.memory_space<vmem>>, vector<2x8x32xf32>
      %c0_61 = arith.constant 0 : index
      %c0_62 = arith.constant 0 : index
      %127 = vector.load %arg3[%c0_61, %c0_62] : memref<1x32xf32, #tpu.memory_space<vmem>>, vector<1x32xf32>
      %128 = vector.shape_cast %127 : vector<1x32xf32> to vector<1x1x32xf32>
      %129 = vector.broadcast %128 : vector<1x1x32xf32> to vector<2x8x32xf32>
      %130 = arith.addf %126, %129 : vector<2x8x32xf32>
      %c0_63 = arith.constant 0 : index
      %c0_64 = arith.constant 0 : index
      %c0_65 = arith.constant 0 : index
      %131 = vector.load %arg15[%c0_63, %c0_64, %c0_65] : memref<2x8x32xf32, #tpu.memory_space<vmem>>, vector<2x8x32xf32>
      tpu.vector_store %arg15[%c0_63, %c0_64, %c0_65], %130 {strides = array<i32>} : memref<2x8x32xf32, #tpu.memory_space<vmem>>, vector<2x8x32xf32>,
    } else {
    }
    %c0 = arith.constant 0 : index
    %c0_1 = arith.constant 0 : index
    %c0_2 = arith.constant 0 : index
    %3 = vector.load %arg15[%c0, %c0_1, %c0_2] : memref<2x8x32xf32, #tpu.memory_space<vmem>>, vector<2x8x32xf32>
    %4 = vector.shape_cast %3 : vector<2x8x32xf32> to vector<16x32xf32>
    %5 = vector.shape_cast %4 : vector<16x32xf32> to vector<2x8x32xf32>
    %6 = vector.extract_strided_slice %5 {offsets = [0, 0, 0], sizes = [2, 8, 8], strides = [1, 1, 1]} : vector<2x8x32xf32> to vector<2x8x8xf32>
    %7 = vector.extract_strided_slice %5 {offsets = [0, 0, 8], sizes = [2, 8, 8], strides = [1, 1, 1]} : vector<2x8x32xf32> to vector<2x8x8xf32>
    %8 = vector.extract_strided_slice %5 {offsets = [0, 0, 16], sizes = [2, 8, 8], strides = [1, 1, 1]} : vector<2x8x32xf32> to vector<2x8x8xf32>
    %9 = vector.extract_strided_slice %5 {offsets = [0, 0, 24], sizes = [2, 8, 8], strides = [1, 1, 1]} : vector<2x8x32xf32> to vector<2x8x8xf32>
    %10 = tpu.concatenate %6, %7, %8, %9 in 0 : vector<2x8x8xf32>, vector<2x8x8xf32>, vector<2x8x8xf32>, vector<2x8x8xf32> -> vector<8x8x8xf32>
    %11 = vector.shape_cast %10 : vector<8x8x8xf32> to vector<64x8xf32>
    %12 = arith.truncf %11 : vector<64x8xf32> to vector<64x8xbf16>
    %c0_3 = arith.constant 0 : index
    %c0_4 = arith.constant 0 : index
    %c0_5 = arith.constant 0 : index
    %13 = vector.load %arg4[%c0_3, %c0_4, %c0_5] : memref<1x8x24xbf16, #tpu.memory_space<vmem>>, vector<1x8x24xbf16>
    %14 = vector.shape_cast %13 : vector<1x8x24xbf16> to vector<8x24xbf16>
    %cst = arith.constant dense<0.000000e+00> : vector<64x24xf32>
    %15 = tpu.matmul %12, %14, %cst {dimension_numbers = #tpu.dot_dimension_numbers<[1], [0], [0], [1], [0, 0, 1, 1], [], []>} : vector<64x8xbf16>, vector<8x24xbf16>, vector<64x24xf32> -> vector<64x24xf32>
    %16 = vector.shape_cast %15 : vector<64x24xf32> to vector<8x8x24xf32>
    %17 = vector.extract_strided_slice %16 {offsets = [0, 0, 0], sizes = [8, 8, 8], strides = [1, 1, 1]} : vector<8x8x24xf32> to vector<8x8x8xf32>
    %18 = arith.truncf %17 : vector<8x8x8xf32> to vector<8x8x8xbf16>
    %19 = vector.extract_strided_slice %16 {offsets = [0, 0, 8], sizes = [8, 8, 8], strides = [1, 1, 1]} : vector<8x8x24xf32> to vector<8x8x8xf32>
    %20 = arith.truncf %19 : vector<8x8x8xf32> to vector<8x8x8xbf16>
    %21 = vector.extract_strided_slice %16 {offsets = [0, 0, 16], sizes = [8, 8, 8], strides = [1, 1, 1]} : vector<8x8x24xf32> to vector<8x8x8xf32>
    %22 = arith.truncf %21 : vector<8x8x8xf32> to vector<8x8x8xbf16>
    "tpu.trace_start"() <{level = 10 : i32, message = "zqd,zkd->zqk"}> : () -> ()
    %cst_6 = arith.constant dense<0.000000e+00> : vector<8x8x8xf32>
    %23 = tpu.matmul %18, %20, %cst_6 {dimension_numbers = #tpu.dot_dimension_numbers<[2], [2], [1], [1], [0, 0, 0, 1, 1, 1], [0], [0]>} : vector<8x8x8xbf16>, vector<8x8x8xbf16>, vector<8x8x8xf32> -> vector<8x8x8xf32>
    "tpu.trace_stop"() : () -> ()
    %cst_7 = arith.constant dense<0xFF800000> : vector<8x8xf32>
    %24 = vector.multi_reduction <maximumf>, %23, %cst_7 [2] : vector<8x8x8xf32> to vector<8x8xf32>
    %25 = vector.shape_cast %24 : vector<8x8xf32> to vector<8x8x1xf32>
    %26 = vector.broadcast %25 : vector<8x8x1xf32> to vector<8x8x8xf32>
    %27 = arith.subf %23, %26 : vector<8x8x8xf32>
    %28 = math.exp %27 : vector<8x8x8xf32>
    %cst_8 = arith.constant dense<0.000000e+00> : vector<8x8xf32>
    %29 = vector.multi_reduction <add>, %28, %cst_8 [2] : vector<8x8x8xf32> to vector<8x8xf32>
    %30 = vector.shape_cast %29 : vector<8x8xf32> to vector<8x8x1xf32>
    %31 = tpu.reciprocal %30 {approx = true} : vector<8x8x1xf32> -> vector<8x8x1xf32>
    %32 = vector.broadcast %31 : vector<8x8x1xf32> to vector<8x8x8xf32>
    %33 = arith.mulf %28, %32 : vector<8x8x8xf32>
    %34 = arith.truncf %33 : vector<8x8x8xf32> to vector<8x8x8xbf16>
    "tpu.trace_start"() <{level = 10 : i32, message = "zqk,zkd->zqd"}> : () -> ()
    %cst_9 = arith.constant dense<0.000000e+00> : vector<8x8x8xf32>
    %35 = tpu.matmul %34, %22, %cst_9 {dimension_numbers = #tpu.dot_dimension_numbers<[2], [1], [1], [2], [0, 0, 0, 1, 1, 2], [0], [0]>} : vector<8x8x8xbf16>, vector<8x8x8xbf16>, vector<8x8x8xf32> -> vector<8x8x8xf32>
    "tpu.trace_stop"() : () -> ()
    %36 = vector.extract_strided_slice %35 {offsets = [0, 0, 0], sizes = [2, 8, 8], strides = [1, 1, 1]} : vector<8x8x8xf32> to vector<2x8x8xf32>
    %37 = vector.extract_strided_slice %35 {offsets = [2, 0, 0], sizes = [2, 8, 8], strides = [1, 1, 1]} : vector<8x8x8xf32> to vector<2x8x8xf32>
    %38 = vector.extract_strided_slice %35 {offsets = [4, 0, 0], sizes = [2, 8, 8], strides = [1, 1, 1]} : vector<8x8x8xf32> to vector<2x8x8xf32>
    %39 = vector.extract_strided_slice %35 {offsets = [6, 0, 0], sizes = [2, 8, 8], strides = [1, 1, 1]} : vector<8x8x8xf32> to vector<2x8x8xf32>
    %40 = tpu.concatenate %36, %37, %38, %39 in 2 : vector<2x8x8xf32>, vector<2x8x8xf32>, vector<2x8x8xf32>, vector<2x8x8xf32> -> vector<2x8x32xf32>
    %41 = vector.shape_cast %40 : vector<2x8x32xf32> to vector<16x32xf32>
    %42 = arith.truncf %41 : vector<16x32xf32> to vector<16x32xbf16>
    %c0_10 = arith.constant 0 : index
    %c0_11 = arith.constant 0 : index
    %c0_12 = arith.constant 0 : index
    %43 = vector.load %arg5[%c0_10, %c0_11, %c0_12] : memref<1x32x32xbf16, #tpu.memory_space<vmem>>, vector<1x32x32xbf16>
    %44 = vector.shape_cast %43 : vector<1x32x32xbf16> to vector<32x32xbf16>
    %cst_13 = arith.constant dense<0.000000e+00> : vector<16x32xf32>
    %45 = tpu.matmul %42, %44, %cst_13 {dimension_numbers = #tpu.dot_dimension_numbers<[1], [0], [0], [1], [0, 0, 1, 1], [], []>} : vector<16x32xbf16>, vector<32x32xbf16>, vector<16x32xf32> -> vector<16x32xf32>
    %c0_14 = arith.constant 0 : index
    %c0_15 = arith.constant 0 : index
    %c0_16 = arith.constant 0 : index
    %46 = vector.load %arg6[%c0_14, %c0_15, %c0_16] : memref<1x1x32xf32, #tpu.memory_space<vmem>>, vector<1x1x32xf32>
    %47 = vector.shape_cast %46 : vector<1x1x32xf32> to vector<1x32xf32>
    %48 = vector.broadcast %47 : vector<1x32xf32> to vector<16x32xf32>
    %49 = arith.addf %45, %48 : vector<16x32xf32>
    %50 = arith.addf %49, %4 : vector<16x32xf32>
    %c0_17 = arith.constant 0 : index
    %c0_18 = arith.constant 0 : index
    %c0_19 = arith.constant 0 : index
    %51 = vector.load %arg7[%c0_17, %c0_18, %c0_19] : memref<1x1x32xf32, #tpu.memory_space<vmem>>, vector<1x1x32xf32>
    %52 = vector.shape_cast %51 : vector<1x1x32xf32> to vector<1x32xf32>
    %c0_20 = arith.constant 0 : index
    %c0_21 = arith.constant 0 : index
    %c0_22 = arith.constant 0 : index
    %53 = vector.load %arg8[%c0_20, %c0_21, %c0_22] : memref<1x1x32xf32, #tpu.memory_space<vmem>>, vector<1x1x32xf32>
    %54 = vector.shape_cast %53 : vector<1x1x32xf32> to vector<1x32xf32>
    %cst_23 = arith.constant dense<0.000000e+00> : vector<16xf32>
    %55 = vector.multi_reduction <add>, %50, %cst_23 [1] : vector<16x32xf32> to vector<16xf32>
    %56 = vector.shape_cast %55 : vector<16xf32> to vector<16x1xf32>
    %cst_24 = arith.constant 3.200000e+01 : f32
    %57 = vector.broadcast %cst_24 : f32 to vector<16x1xf32>
    %58 = arith.divf %56, %57 : vector<16x1xf32>
    %59 = vector.broadcast %58 : vector<16x1xf32> to vector<16x32xf32>
    %60 = arith.subf %50, %59 : vector<16x32xf32>
    %61 = arith.mulf %60, %60 : vector<16x32xf32>
    %cst_25 = arith.constant dense<0.000000e+00> : vector<16xf32>
    %62 = vector.multi_reduction <add>, %61, %cst_25 [1] : vector<16x32xf32> to vector<16xf32>
    %63 = vector.shape_cast %62 : vector<16xf32> to vector<16x1xf32>
    %cst_26 = arith.constant 3.200000e+01 : f32
    %64 = vector.broadcast %cst_26 : f32 to vector<16x1xf32>
    %65 = arith.divf %63, %64 : vector<16x1xf32>
    %66 = vector.broadcast %58 : vector<16x1xf32> to vector<16x32xf32>
    %67 = arith.subf %50, %66 : vector<16x32xf32>
    %cst_27 = arith.constant 9.99999974E-6 : f32
    %68 = vector.broadcast %cst_27 : f32 to vector<16x1xf32>
    %69 = arith.addf %65, %68 : vector<16x1xf32>
    %70 = math.rsqrt %69 : vector<16x1xf32>
    %71 = vector.broadcast %70 : vector<16x1xf32> to vector<16x32xf32>
    %72 = arith.mulf %67, %71 : vector<16x32xf32>
    %73 = vector.broadcast %52 : vector<1x32xf32> to vector<16x32xf32>
    %74 = arith.mulf %72, %73 : vector<16x32xf32>
    %75 = vector.broadcast %54 : vector<1x32xf32> to vector<16x32xf32>
    %76 = arith.addf %74, %75 : vector<16x32xf32>
    %77 = arith.truncf %76 : vector<16x32xf32> to vector<16x32xbf16>
    %cst_28 = arith.constant 0.000000e+00 : f32
    %78 = vector.broadcast %cst_28 : f32 to vector<16x32xf32>
    %c0_29 = arith.constant 0 : index
    %c0_30 = arith.constant 0 : index
    %c0_31 = arith.constant 0 : index
    %79 = vector.load %arg9[%c0_29, %c0_30, %c0_31] : memref<1x32x128xbf16, #tpu.memory_space<vmem>>, vector<1x32x128xbf16>
    %80 = vector.shape_cast %79 : vector<1x32x128xbf16> to vector<32x128xbf16>
    %cst_32 = arith.constant dense<0.000000e+00> : vector<16x128xf32>
    %81 = tpu.matmul %77, %80, %cst_32 {dimension_numbers = #tpu.dot_dimension_numbers<[1], [0], [0], [1], [0, 0, 1, 1], [], []>} : vector<16x32xbf16>, vector<32x128xbf16>, vector<16x128xf32> -> vector<16x128xf32>
    %c0_33 = arith.constant 0 : index
    %c0_34 = arith.constant 0 : index
    %c0_35 = arith.constant 0 : index
    %82 = vector.load %arg10[%c0_33, %c0_34, %c0_35] : memref<1x1x128xf32, #tpu.memory_space<vmem>>, vector<1x1x128xf32>
    %83 = vector.shape_cast %82 : vector<1x1x128xf32> to vector<1x128xf32>
    %84 = vector.broadcast %83 : vector<1x128xf32> to vector<16x128xf32>
    %85 = arith.addf %81, %84 : vector<16x128xf32>
    %cst_36 = arith.constant 0.000000e+00 : f32
    %86 = vector.broadcast %cst_36 : f32 to vector<16x128xf32>
    %87 = arith.maximumf %85, %86 : vector<16x128xf32>
    %88 = arith.truncf %87 : vector<16x128xf32> to vector<16x128xbf16>
    %c0_37 = arith.constant 0 : index
    %c0_38 = arith.constant 0 : index
    %c0_39 = arith.constant 0 : index
    %89 = vector.load %arg11[%c0_37, %c0_38, %c0_39] : memref<1x128x32xbf16, #tpu.memory_space<vmem>>, vector<1x128x32xbf16>
    %90 = vector.shape_cast %89 : vector<1x128x32xbf16> to vector<128x32xbf16>
    %cst_40 = arith.constant dense<0.000000e+00> : vector<16x32xf32>
    %91 = tpu.matmul %88, %90, %cst_40 {dimension_numbers = #tpu.dot_dimension_numbers<[1], [0], [0], [1], [0, 0, 1, 1], [], []>} : vector<16x128xbf16>, vector<128x32xbf16>, vector<16x32xf32> -> vector<16x32xf32>
    %92 = arith.addf %78, %91 : vector<16x32xf32>
    %c0_41 = arith.constant 0 : index
    %c0_42 = arith.constant 0 : index
    %c0_43 = arith.constant 0 : index
    %93 = vector.load %arg12[%c0_41, %c0_42, %c0_43] : memref<1x1x32xf32, #tpu.memory_space<vmem>>, vector<1x1x32xf32>
    %94 = vector.shape_cast %93 : vector<1x1x32xf32> to vector<1x32xf32>
    %95 = vector.broadcast %94 : vector<1x32xf32> to vector<16x32xf32>
    %96 = arith.addf %92, %95 : vector<16x32xf32>
    %97 = arith.addf %96, %76 : vector<16x32xf32>
    %c0_44 = arith.constant 0 : index
    %c0_45 = arith.constant 0 : index
    %c0_46 = arith.constant 0 : index
    %98 = vector.load %arg13[%c0_44, %c0_45, %c0_46] : memref<1x1x32xf32, #tpu.memory_space<vmem>>, vector<1x1x32xf32>
    %99 = vector.shape_cast %98 : vector<1x1x32xf32> to vector<1x32xf32>
    %c0_47 = arith.constant 0 : index
    %c0_48 = arith.constant 0 : index
    %c0_49 = arith.constant 0 : index
    %100 = vector.load %arg14[%c0_47, %c0_48, %c0_49] : memref<1x1x32xf32, #tpu.memory_space<vmem>>, vector<1x1x32xf32>
    %101 = vector.shape_cast %100 : vector<1x1x32xf32> to vector<1x32xf32>
    %cst_50 = arith.constant dense<0.000000e+00> : vector<16xf32>
    %102 = vector.multi_reduction <add>, %97, %cst_50 [1] : vector<16x32xf32> to vector<16xf32>
    %103 = vector.shape_cast %102 : vector<16xf32> to vector<16x1xf32>
    %cst_51 = arith.constant 3.200000e+01 : f32
    %104 = vector.broadcast %cst_51 : f32 to vector<16x1xf32>
    %105 = arith.divf %103, %104 : vector<16x1xf32>
    %106 = vector.broadcast %105 : vector<16x1xf32> to vector<16x32xf32>
    %107 = arith.subf %97, %106 : vector<16x32xf32>
    %108 = arith.mulf %107, %107 : vector<16x32xf32>
    %cst_52 = arith.constant dense<0.000000e+00> : vector<16xf32>
    %109 = vector.multi_reduction <add>, %108, %cst_52 [1] : vector<16x32xf32> to vector<16xf32>
    %110 = vector.shape_cast %109 : vector<16xf32> to vector<16x1xf32>
    %cst_53 = arith.constant 3.200000e+01 : f32
    %111 = vector.broadcast %cst_53 : f32 to vector<16x1xf32>
    %112 = arith.divf %110, %111 : vector<16x1xf32>
    %113 = vector.broadcast %105 : vector<16x1xf32> to vector<16x32xf32>
    %114 = arith.subf %97, %113 : vector<16x32xf32>
    %cst_54 = arith.constant 9.99999974E-6 : f32
    %115 = vector.broadcast %cst_54 : f32 to vector<16x1xf32>
    %116 = arith.addf %112, %115 : vector<16x1xf32>
    %117 = math.rsqrt %116 : vector<16x1xf32>
    %118 = vector.broadcast %117 : vector<16x1xf32> to vector<16x32xf32>
    %119 = arith.mulf %114, %118 : vector<16x32xf32>
    %120 = vector.broadcast %99 : vector<1x32xf32> to vector<16x32xf32>
    %121 = arith.mulf %119, %120 : vector<16x32xf32>
    %122 = vector.broadcast %101 : vector<1x32xf32> to vector<16x32xf32>
    %123 = arith.addf %121, %122 : vector<16x32xf32>
    %124 = vector.shape_cast %123 : vector<16x32xf32> to vector<2x8x32xf32>
    %c0_55 = arith.constant 0 : index
    %c0_56 = arith.constant 0 : index
    %c0_57 = arith.constant 0 : index
    %125 = vector.load %arg15[%c0_55, %c0_56, %c0_57] : memref<2x8x32xf32, #tpu.memory_space<vmem>>, vector<2x8x32xf32>
    tpu.vector_store %arg15[%c0_55, %c0_56, %c0_57], %124 {strides = array<i32>} : memref<2x8x32xf32, #tpu.memory_space<vmem>>, vector<2x8x32xf32>,
    return
  }
  func.func @transform_0(%arg0: i32, %arg1: i32) -> (i32, i32, i32) {
    %c0_i32 = arith.constant 0 : i32
    %c0_i32_0 = arith.constant 0 : i32
    %c0_i32_1 = arith.constant 0 : i32
    return %arg0, %c0_i32, %c0_i32_0 : i32, i32, i32
  }
  func.func @transform_1(%arg0: i32, %arg1: i32) -> (i32, i32) {
    %c0_i32 = arith.constant 0 : i32
    %c0_i32_0 = arith.constant 0 : i32
    %c0_i32_1 = arith.constant 0 : i32
    return %c0_i32, %c0_i32_0 : i32, i32
  }
  func.func @transform_2(%arg0: i32, %arg1: i32) -> (i32, i32, i32) {
    %c0_i32 = arith.constant 0 : i32
    %c0_i32_0 = arith.constant 0 : i32
    %c0_i32_1 = arith.constant 0 : i32
    return %arg1, %c0_i32, %c0_i32_0 : i32, i32, i32
  }
  func.func @transform_3(%arg0: i32, %arg1: i32) -> (i32, i32, i32) {
    %c0_i32 = arith.constant 0 : i32
    %c0_i32_0 = arith.constant 0 : i32
    %c0_i32_1 = arith.constant 0 : i32
    return %arg1, %c0_i32, %c0_i32_0 : i32, i32, i32
  }
  func.func @transform_4(%arg0: i32, %arg1: i32) -> (i32, i32, i32) {
    %c0_i32 = arith.constant 0 : i32
    %c0_i32_0 = arith.constant 0 : i32
    %c0_i32_1 = arith.constant 0 : i32
    return %arg1, %c0_i32, %c0_i32_0 : i32, i32, i32
  }
  func.func @transform_5(%arg0: i32, %arg1: i32) -> (i32, i32, i32) {
    %c0_i32 = arith.constant 0 : i32
    %c0_i32_0 = arith.constant 0 : i32
    %c0_i32_1 = arith.constant 0 : i32
    return %arg1, %c0_i32, %c0_i32_0 : i32, i32, i32
  }
  func.func @transform_6(%arg0: i32, %arg1: i32) -> (i32, i32, i32) {
    %c0_i32 = arith.constant 0 : i32
    %c0_i32_0 = arith.constant 0 : i32
    %c0_i32_1 = arith.constant 0 : i32
    return %arg1, %c0_i32, %c0_i32_0 : i32, i32, i32
  }
  func.func @transform_7(%arg0: i32, %arg1: i32) -> (i32, i32, i32) {
    %c0_i32 = arith.constant 0 : i32
    %c0_i32_0 = arith.constant 0 : i32
    %c0_i32_1 = arith.constant 0 : i32
    return %arg1, %c0_i32, %c0_i32_0 : i32, i32, i32
  }
  func.func @transform_8(%arg0: i32, %arg1: i32) -> (i32, i32, i32) {
    %c0_i32 = arith.constant 0 : i32
    %c0_i32_0 = arith.constant 0 : i32
    %c0_i32_1 = arith.constant 0 : i32
    return %arg1, %c0_i32, %c0_i32_0 : i32, i32, i32
  }
  func.func @transform_9(%arg0: i32, %arg1: i32) -> (i32, i32, i32) {
    %c0_i32 = arith.constant 0 : i32
    %c0_i32_0 = arith.constant 0 : i32
    %c0_i32_1 = arith.constant 0 : i32
    return %arg1, %c0_i32, %c0_i32_0 : i32, i32, i32
  }
  func.func @transform_10(%arg0: i32, %arg1: i32) -> (i32, i32, i32) {
    %c0_i32 = arith.constant 0 : i32
    %c0_i32_0 = arith.constant 0 : i32
    %c0_i32_1 = arith.constant 0 : i32
    return %arg1, %c0_i32, %c0_i32_0 : i32, i32, i32
  }
  func.func @transform_11(%arg0: i32, %arg1: i32) -> (i32, i32, i32) {
    %c0_i32 = arith.constant 0 : i32
    %c0_i32_0 = arith.constant 0 : i32
    %c0_i32_1 = arith.constant 0 : i32
    return %arg1, %c0_i32, %c0_i32_0 : i32, i32, i32
  }
  func.func @transform_12(%arg0: i32, %arg1: i32) -> (i32, i32, i32) {
    %c0_i32 = arith.constant 0 : i32
    %c0_i32_0 = arith.constant 0 : i32
    %c0_i32_1 = arith.constant 0 : i32
    return %arg1, %c0_i32, %c0_i32_0 : i32, i32, i32
  }
  func.func @transform_13(%arg0: i32, %arg1: i32) -> (i32, i32, i32) {
    %c0_i32 = arith.constant 0 : i32
    %c0_i32_0 = arith.constant 0 : i32
    %c0_i32_1 = arith.constant 0 : i32
    return %arg0, %c0_i32, %c0_i32_0 : i32, i32, i32
  }
}

</mosaic_0001>

<llo_original>
// kernel: tpu_custom_call.1
$region0: #{tpu_custom_call.1}
  #allocation0 [shape = 'u32[]', space=smem, size = 0x4, offset = 0x4, fixed_abs, tag = 'smem constant byte address 0x4 - core index']
  #allocation1 [shape = 'u32[144,128]{1,0:T(1,128)}', space=vmem, size = 0x12000, scoped, tag = 'internal scratch']
  %s0 = inlined_call_operand.vmem [shape: f32[2,8,32], index: 0, kind: input, shape index: {}]
  %s1 = inlined_call_operand.vmem [shape: f32[1,32], index: 1, kind: input, shape index: {}]
  %s2 = inlined_call_operand.vmem [shape: bf16[2,8,24], index: 2, kind: input, shape index: {}]
  %s3 = inlined_call_operand.vmem [shape: bf16[2,32,32], index: 3, kind: input, shape index: {}]
  %s4 = inlined_call_operand.vmem [shape: f32[2,1,32], index: 4, kind: input, shape index: {}]
  %s5 = inlined_call_operand.vmem [shape: f32[2,1,32], index: 5, kind: input, shape index: {}]
  %s6 = inlined_call_operand.vmem [shape: f32[2,1,32], index: 6, kind: input, shape index: {}]
  %s7 = inlined_call_operand.vmem [shape: bf16[2,32,128], index: 7, kind: input, shape index: {}]
  %s8 = inlined_call_operand.vmem [shape: f32[2,1,128], index: 8, kind: input, shape index: {}]
  %s9 = inlined_call_operand.vmem [shape: bf16[2,128,32], index: 9, kind: input, shape index: {}]
  %s10 = inlined_call_operand.vmem [shape: f32[2,1,32], index: 10, kind: input, shape index: {}]
  %s11 = inlined_call_operand.vmem [shape: f32[2,1,32], index: 11, kind: input, shape index: {}]
  %s12 = inlined_call_operand.vmem [shape: f32[2,1,32], index: 12, kind: input, shape index: {}]
  %s13 = inlined_call_operand.hbm [shape: f32[2,8,32], index: 13, kind: output, shape index: {}]
  %s14 = sld [smem:[#allocation0]]
  $region89: #{tpu_custom_call.1} parent=0
    _
  %s16 = ssub.s32 1, %s14
  %s17 = scalar_select 0, %s16, %s14
  $region1: #{tpu_custom_call.1} parent=0
    #allocation2 [shape = 'u8[8192]{0}', space=vmem, size = 0x2000, scoped, tag = 'output window, operand 0, single buffered']
    #allocation3 [shape = 's32[2]{0}', space=sflag, size = 0x8, scoped, tag = 'scoped memory for tpu_custom_call.1']
    %18 = vsyncpa [#allocation3], 0
    loop: start=0, step=1, limit=4
    $region2: #{tpu_custom_call.1} parent=1 // loop_pre_header
      _
    $region3: #{tpu_custom_call.1} parent=1 // loop_header
      %s20 = sphi 0, %s24
      %p21 = scmp.ge.s32.totalorder %s20, 4
      %s27 = sphi 0, %s39
      %s28 = sphi 0, %s35
      %s29 = sphi 0, %s27
      %s30 = sphi 0, %s28
      %s31 = sphi 0, %s29
      %s32 = sphi 0, %s30
      %s42 = sphi 0, %s44
      %s45 = sphi 0, %s42
      %s46 = sphi 0, %s45
      %s62 = sphi 0, %s46
      %s66 = sphi 0, %s66
      %s68 = sphi 0, %s66
      %s69 = sphi 0, %s68
      %s83 = sphi 0, %s69
      %s89 = sphi 0, %s91
      %s92 = sphi 0, %s89
      %s93 = sphi 0, %s92
      %s109 = sphi 0, %s93
      %s115 = sphi 0, %s117
      %s118 = sphi 0, %s115
      %s119 = sphi 0, %s118
      %s135 = sphi 0, %s119
      %s141 = sphi 0, %s143
      %s144 = sphi 0, %s141
      %s145 = sphi 0, %s144
      %s161 = sphi 0, %s145
      %s167 = sphi 0, %s169
      %s170 = sphi 0, %s167
      %s171 = sphi 0, %s170
      %s187 = sphi 0, %s171
      %s193 = sphi 0, %s195
      %s196 = sphi 0, %s193
      %s197 = sphi 0, %s196
      %s213 = sphi 0, %s197
      %s219 = sphi 0, %s221
      %s222 = sphi 0, %s219
      %s223 = sphi 0, %s222
      %s239 = sphi 0, %s223
      %s245 = sphi 0, %s247
      %s248 = sphi 0, %s245
      %s249 = sphi 0, %s248
      %s265 = sphi 0, %s249
      %s271 = sphi 0, %s273
      %s274 = sphi 0, %s271
      %s275 = sphi 0, %s274
      %s291 = sphi 0, %s275
      %s297 = sphi 0, %s299
      %s300 = sphi 0, %s297
      %s301 = sphi 0, %s300
      %s317 = sphi 0, %s301
      %s323 = sphi 0, %s325
      %s326 = sphi 0, %s323
      %s327 = sphi 0, %s326
      %s343 = sphi 0, %s327
      %s349 = sphi 0, %s351
      %s352 = sphi 0, %s349
      %s353 = sphi 0, %s352
      %s369 = sphi 0, %s353
      %s375 = sphi 0, %s377
      %s378 = sphi 0, %s375
      %s379 = sphi 0, %s378
      %s395 = sphi 0, %s379
    $region4: #{tpu_custom_call.1} parent=1 // loop_header_branch
      %23 = sbr.rel (%p21) target = $region8
    $region5: #{tpu_custom_call.1} parent=1 // loop_body
      %s25 = ssub.s32 %s20, 1
      %s26 = ssub.s32 %s20, 2
      %s33 = sadd.s32 1, %s28
      %p34 = scmp.ge.s32.totalorder %s33, 2
      %s35 = scalar_select %p34, 0, %s33
      %s36 = sadd.s32 1, %s27
      %s37 = scalar_select %p34, %s36, %s27
      %p38 = scmp.ge.s32.totalorder %s37, 1
      %s39 = scalar_select %p38, 0, %s37
      %s40 = ssub.s32 %s27, %s39
      %p41 = scmp.eq.s32.totalorder %s40, 0
      %s43 = sadd.s32 %s42, 1
      %s44 = scalar_select %p41, %s42, %s43
      %p47 = pneg %p41
      %p48 = scmp.eq.s32.totalorder %s20, 1
      %p49 = por %p47, %p48
      %p50 = scmp.ne.s32.totalorder %s42, %s45
      %p51 = scmp.eq.s32.totalorder %s20, 0
      %p52 = por %p50, %p51
      %p53 = scmp.ne.s32.totalorder %s42, %s45
      %p54 = scmp.eq.s32.totalorder %s25, 1
      %p55 = por %p53, %p54
      %p56 = scmp.ne.s32.totalorder %s45, %s46
      %p57 = scmp.eq.s32.totalorder %s25, 0
      %p58 = por %p56, %p57
      %p59 = scmp.ne.s32.totalorder %s45, %s46
      %p60 = scmp.eq.s32.totalorder %s26, 1
      %p61 = por %p59, %p60
      %p63 = scmp.ne.s32.totalorder %s46, %s62
      %p64 = scmp.eq.s32.totalorder %s26, 0
      %p65 = por %p63, %p64
      %s67 = sadd.s32 %s66, 1
      %p70 = scmp.eq.s32.totalorder %s20, 1
      %p71 = scmp.ne.s32.totalorder %s66, %s68
      %p72 = scmp.eq.s32.totalorder %s20, 0
      %p73 = por %p71, %p72
      %p74 = scmp.ne.s32.totalorder %s66, %s68
      %p75 = scmp.eq.s32.totalorder %s25, 1
      %p76 = por %p74, %p75
      %p77 = scmp.ne.s32.totalorder %s68, %s69
      %p78 = scmp.eq.s32.totalorder %s25, 0
      %p79 = por %p77, %p78
      %p80 = scmp.ne.s32.totalorder %s68, %s69
      %p81 = scmp.eq.s32.totalorder %s26, 1
      %p82 = por %p80, %p81
      %p84 = scmp.ne.s32.totalorder %s69, %s83
      %p85 = scmp.eq.s32.totalorder %s26, 0
      %p86 = por %p84, %p85
      %s87 = ssub.s32 %s28, %s35
      %p88 = scmp.eq.s32.totalorder %s87, 0
      %s90 = sadd.s32 %s89, 1
      %s91 = scalar_select %p88, %s89, %s90
      %p94 = pneg %p88
      %p95 = scmp.eq.s32.totalorder %s20, 1
      %p96 = por %p94, %p95
      %p97 = scmp.ne.s32.totalorder %s89, %s92
      %p98 = scmp.eq.s32.totalorder %s20, 0
      %p99 = por %p97, %p98
      %p100 = scmp.ne.s32.totalorder %s89, %s92
      %p101 = scmp.eq.s32.totalorder %s25, 1
      %p102 = por %p100, %p101
      %p103 = scmp.ne.s32.totalorder %s92, %s93
      %p104 = scmp.eq.s32.totalorder %s25, 0
      %p105 = por %p103, %p104
      %p106 = scmp.ne.s32.totalorder %s92, %s93
      %p107 = scmp.eq.s32.totalorder %s26, 1
      %p108 = por %p106, %p107
      %p110 = scmp.ne.s32.totalorder %s93, %s109
      %p111 = scmp.eq.s32.totalorder %s26, 0
      %p112 = por %p110, %p111
      %s113 = ssub.s32 %s28, %s35
      %p114 = scmp.eq.s32.totalorder %s113, 0
      %s116 = sadd.s32 %s115, 1
      %s117 = scalar_select %p114, %s115, %s116
      %p120 = pneg %p114
      %p121 = scmp.eq.s32.totalorder %s20, 1
      %p122 = por %p120, %p121
      %p123 = scmp.ne.s32.totalorder %s115, %s118
      %p124 = scmp.eq.s32.totalorder %s20, 0
      %p125 = por %p123, %p124
      %p126 = scmp.ne.s32.totalorder %s115, %s118
      %p127 = scmp.eq.s32.totalorder %s25, 1
      %p128 = por %p126, %p127
      %p129 = scmp.ne.s32.totalorder %s118, %s119
      %p130 = scmp.eq.s32.totalorder %s25, 0
      %p131 = por %p129, %p130
      %p132 = scmp.ne.s32.totalorder %s118, %s119
      %p133 = scmp.eq.s32.totalorder %s26, 1
      %p134 = por %p132, %p133
      %p136 = scmp.ne.s32.totalorder %s119, %s135
      %p137 = scmp.eq.s32.totalorder %s26, 0
      %p138 = por %p136, %p137
      %s139 = ssub.s32 %s28, %s35
      %p140 = scmp.eq.s32.totalorder %s139, 0
      %s142 = sadd.s32 %s141, 1
      %s143 = scalar_select %p140, %s141, %s142
      %p146 = pneg %p140
      %p147 = scmp.eq.s32.totalorder %s20, 1
      %p148 = por %p146, %p147
      %p149 = scmp.ne.s32.totalorder %s141, %s144
      %p150 = scmp.eq.s32.totalorder %s20, 0
      %p151 = por %p149, %p150
      %p152 = scmp.ne.s32.totalorder %s141, %s144
      %p153 = scmp.eq.s32.totalorder %s25, 1
      %p154 = por %p152, %p153
      %p155 = scmp.ne.s32.totalorder %s144, %s145
      %p156 = scmp.eq.s32.totalorder %s25, 0
      %p157 = por %p155, %p156
      %p158 = scmp.ne.s32.totalorder %s144, %s145
      %p159 = scmp.eq.s32.totalorder %s26, 1
      %p160 = por %p158, %p159
      %p162 = scmp.ne.s32.totalorder %s145, %s161
      %p163 = scmp.eq.s32.totalorder %s26, 0
      %p164 = por %p162, %p163
      %s165 = ssub.s32 %s28, %s35
      %p166 = scmp.eq.s32.totalorder %s165, 0
      %s168 = sadd.s32 %s167, 1
      %s169 = scalar_select %p166, %s167, %s168
      %p172 = pneg %p166
      %p173 = scmp.eq.s32.totalorder %s20, 1
      %p174 = por %p172, %p173
      %p175 = scmp.ne.s32.totalorder %s167, %s170
      %p176 = scmp.eq.s32.totalorder %s20, 0
      %p177 = por %p175, %p176
      %p178 = scmp.ne.s32.totalorder %s167, %s170
      %p179 = scmp.eq.s32.totalorder %s25, 1
      %p180 = por %p178, %p179
      %p181 = scmp.ne.s32.totalorder %s170, %s171
      %p182 = scmp.eq.s32.totalorder %s25, 0
      %p183 = por %p181, %p182
      %p184 = scmp.ne.s32.totalorder %s170, %s171
      %p185 = scmp.eq.s32.totalorder %s26, 1
      %p186 = por %p184, %p185
      %p188 = scmp.ne.s32.totalorder %s171, %s187
      %p189 = scmp.eq.s32.totalorder %s26, 0
      %p190 = por %p188, %p189
      %s191 = ssub.s32 %s28, %s35
      %p192 = scmp.eq.s32.totalorder %s191, 0
      %s194 = sadd.s32 %s193, 1
      %s195 = scalar_select %p192, %s193, %s194
      %p198 = pneg %p192
      %p199 = scmp.eq.s32.totalorder %s20, 1
      %p200 = por %p198, %p199
      %p201 = scmp.ne.s32.totalorder %s193, %s196
      %p202 = scmp.eq.s32.totalorder %s20, 0
      %p203 = por %p201, %p202
      %p204 = scmp.ne.s32.totalorder %s193, %s196
      %p205 = scmp.eq.s32.totalorder %s25, 1
      %p206 = por %p204, %p205
      %p207 = scmp.ne.s32.totalorder %s196, %s197
      %p208 = scmp.eq.s32.totalorder %s25, 0
      %p209 = por %p207, %p208
      %p210 = scmp.ne.s32.totalorder %s196, %s197
      %p211 = scmp.eq.s32.totalorder %s26, 1
      %p212 = por %p210, %p211
      %p214 = scmp.ne.s32.totalorder %s197, %s213
      %p215 = scmp.eq.s32.totalorder %s26, 0
      %p216 = por %p214, %p215
      %s217 = ssub.s32 %s28, %s35
      %p218 = scmp.eq.s32.totalorder %s217, 0
      %s220 = sadd.s32 %s219, 1
      %s221 = scalar_select %p218, %s219, %s220
      %p224 = pneg %p218
      %p225 = scmp.eq.s32.totalorder %s20, 1
      %p226 = por %p224, %p225
      %p227 = scmp.ne.s32.totalorder %s219, %s222
      %p228 = scmp.eq.s32.totalorder %s20, 0
      %p229 = por %p227, %p228
      %p230 = scmp.ne.s32.totalorder %s219, %s222
      %p231 = scmp.eq.s32.totalorder %s25, 1
      %p232 = por %p230, %p231
      %p233 = scmp.ne.s32.totalorder %s222, %s223
      %p234 = scmp.eq.s32.totalorder %s25, 0
      %p235 = por %p233, %p234
      %p236 = scmp.ne.s32.totalorder %s222, %s223
      %p237 = scmp.eq.s32.totalorder %s26, 1
      %p238 = por %p236, %p237
      %p240 = scmp.ne.s32.totalorder %s223, %s239
      %p241 = scmp.eq.s32.totalorder %s26, 0
      %p242 = por %p240, %p241
      %s243 = ssub.s32 %s28, %s35
      %p244 = scmp.eq.s32.totalorder %s243, 0
      %s246 = sadd.s32 %s245, 1
      %s247 = scalar_select %p244, %s245, %s246
      %p250 = pneg %p244
      %p251 = scmp.eq.s32.totalorder %s20, 1
      %p252 = por %p250, %p251
      %p253 = scmp.ne.s32.totalorder %s245, %s248
      %p254 = scmp.eq.s32.totalorder %s20, 0
      %p255 = por %p253, %p254
      %p256 = scmp.ne.s32.totalorder %s245, %s248
      %p257 = scmp.eq.s32.totalorder %s25, 1
      %p258 = por %p256, %p257
      %p259 = scmp.ne.s32.totalorder %s248, %s249
      %p260 = scmp.eq.s32.totalorder %s25, 0
      %p261 = por %p259, %p260
      %p262 = scmp.ne.s32.totalorder %s248, %s249
      %p263 = scmp.eq.s32.totalorder %s26, 1
      %p264 = por %p262, %p263
      %p266 = scmp.ne.s32.totalorder %s249, %s265
      %p267 = scmp.eq.s32.totalorder %s26, 0
      %p268 = por %p266, %p267
      %s269 = ssub.s32 %s28, %s35
      %p270 = scmp.eq.s32.totalorder %s269, 0
      %s272 = sadd.s32 %s271, 1
      %s273 = scalar_select %p270, %s271, %s272
      %p276 = pneg %p270
      %p277 = scmp.eq.s32.totalorder %s20, 1
      %p278 = por %p276, %p277
      %p279 = scmp.ne.s32.totalorder %s271, %s274
      %p280 = scmp.eq.s32.totalorder %s20, 0
      %p281 = por %p279, %p280
      %p282 = scmp.ne.s32.totalorder %s271, %s274
      %p283 = scmp.eq.s32.totalorder %s25, 1
      %p284 = por %p282, %p283
      %p285 = scmp.ne.s32.totalorder %s274, %s275
      %p286 = scmp.eq.s32.totalorder %s25, 0
      %p287 = por %p285, %p286
      %p288 = scmp.ne.s32.totalorder %s274, %s275
      %p289 = scmp.eq.s32.totalorder %s26, 1
      %p290 = por %p288, %p289
      %p292 = scmp.ne.s32.totalorder %s275, %s291
      %p293 = scmp.eq.s32.totalorder %s26, 0
      %p294 = por %p292, %p293
      %s295 = ssub.s32 %s28, %s35
      %p296 = scmp.eq.s32.totalorder %s295, 0
      %s298 = sadd.s32 %s297, 1
      %s299 = scalar_select %p296, %s297, %s298
      %p302 = pneg %p296
      %p303 = scmp.eq.s32.totalorder %s20, 1
      %p304 = por %p302, %p303
      %p305 = scmp.ne.s32.totalorder %s297, %s300
      %p306 = scmp.eq.s32.totalorder %s20, 0
      %p307 = por %p305, %p306
      %p308 = scmp.ne.s32.totalorder %s297, %s300
      %p309 = scmp.eq.s32.totalorder %s25, 1
      %p310 = por %p308, %p309
      %p311 = scmp.ne.s32.totalorder %s300, %s301
      %p312 = scmp.eq.s32.totalorder %s25, 0
      %p313 = por %p311, %p312
      %p314 = scmp.ne.s32.totalorder %s300, %s301
      %p315 = scmp.eq.s32.totalorder %s26, 1
      %p316 = por %p314, %p315
      %p318 = scmp.ne.s32.totalorder %s301, %s317
      %p319 = scmp.eq.s32.totalorder %s26, 0
      %p320 = por %p318, %p319
      %s321 = ssub.s32 %s28, %s35
      %p322 = scmp.eq.s32.totalorder %s321, 0
      %s324 = sadd.s32 %s323, 1
      %s325 = scalar_select %p322, %s323, %s324
      %p328 = pneg %p322
      %p329 = scmp.eq.s32.totalorder %s20, 1
      %p330 = por %p328, %p329
      %p331 = scmp.ne.s32.totalorder %s323, %s326
      %p332 = scmp.eq.s32.totalorder %s20, 0
      %p333 = por %p331, %p332
      %p334 = scmp.ne.s32.totalorder %s323, %s326
      %p335 = scmp.eq.s32.totalorder %s25, 1
      %p336 = por %p334, %p335
      %p337 = scmp.ne.s32.totalorder %s326, %s327
      %p338 = scmp.eq.s32.totalorder %s25, 0
      %p339 = por %p337, %p338
      %p340 = scmp.ne.s32.totalorder %s326, %s327
      %p341 = scmp.eq.s32.totalorder %s26, 1
      %p342 = por %p340, %p341
      %p344 = scmp.ne.s32.totalorder %s327, %s343
      %p345 = scmp.eq.s32.totalorder %s26, 0
      %p346 = por %p344, %p345
      %s347 = ssub.s32 %s28, %s35
      %p348 = scmp.eq.s32.totalorder %s347, 0
      %s350 = sadd.s32 %s349, 1
      %s351 = scalar_select %p348, %s349, %s350
      %p354 = pneg %p348
      %p355 = scmp.eq.s32.totalorder %s20, 1
      %p356 = por %p354, %p355
      %p357 = scmp.ne.s32.totalorder %s349, %s352
      %p358 = scmp.eq.s32.totalorder %s20, 0
      %p359 = por %p357, %p358
      %p360 = scmp.ne.s32.totalorder %s349, %s352
      %p361 = scmp.eq.s32.totalorder %s25, 1
      %p362 = por %p360, %p361
      %p363 = scmp.ne.s32.totalorder %s352, %s353
      %p364 = scmp.eq.s32.totalorder %s25, 0
      %p365 = por %p363, %p364
      %p366 = scmp.ne.s32.totalorder %s352, %s353
      %p367 = scmp.eq.s32.totalorder %s26, 1
      %p368 = por %p366, %p367
      %p370 = scmp.ne.s32.totalorder %s353, %s369
      %p371 = scmp.eq.s32.totalorder %s26, 0
      %p372 = por %p370, %p371
      %s373 = ssub.s32 %s27, %s39
      %p374 = scmp.eq.s32.totalorder %s373, 0
      %s376 = sadd.s32 %s375, 1
      %s377 = scalar_select %p374, %s375, %s376
      %p380 = pneg %p374
      %p381 = scmp.eq.s32.totalorder %s20, 1
      %p382 = por %p380, %p381
      %p383 = scmp.ne.s32.totalorder %s375, %s378
      %p384 = scmp.eq.s32.totalorder %s20, 0
      %p385 = por %p383, %p384
      %p386 = scmp.ne.s32.totalorder %s375, %s378
      %p387 = scmp.eq.s32.totalorder %s25, 1
      %p388 = por %p386, %p387
      %p389 = scmp.ne.s32.totalorder %s378, %s379
      %p390 = scmp.eq.s32.totalorder %s25, 0
      %p391 = por %p389, %p390
      %p392 = scmp.ne.s32.totalorder %s378, %s379
      %p393 = scmp.eq.s32.totalorder %s26, 1
      %p394 = por %p392, %p393
      %p396 = scmp.ne.s32.totalorder %s379, %s395
      %p397 = scmp.eq.s32.totalorder %s26, 0
      %p398 = por %p396, %p397
      %p399 = scmp.le.s32.totalorder 1, %s20
      %p400 = scmp.lt.s32.totalorder %s20, 3
      %p401 = pnand %p399, %p400
      %p402 = pneg %p401
      // Predicated region
      $region9: #{tpu_custom_call.1} parent=5 // pred_check
        _
      $region10: #{tpu_custom_call.1} parent=5 // pred_check_branch
        %404 = sbr.rel (%p401) target = $region12
      $region11: #{tpu_custom_call.1} parent=5 // pred_region
        %s405 = ssub.s32 %s20, 1
        // Predicated region
        $region13: #{tpu_custom_call.1} parent=11 // pred_check
          %p406 = pneg %p58
        $region14: #{tpu_custom_call.1} parent=11 // pred_check_branch
          %408 = sbr.rel (%p406) target = $region16
        $region15: #{tpu_custom_call.1} parent=11 // pred_region
          %s409 = smul.u32 2, %s29
          %p410 = scmp.lt.s32.totalorder %s409, 1
          %s411 = scalar_select %p410, %s409, 1
          %s412 = smul.addr %s411, 8
          %s413 = scalar_lea.vmem %s0, %s412
          %s414 = smul.u32 2, %s29
        $region16: #{tpu_custom_call.1} parent=11 // pred_fallthru
          _
        // Predicated region
        $region17: #{tpu_custom_call.1} parent=11 // pred_check
          %p415 = pneg %p79
        $region18: #{tpu_custom_call.1} parent=11 // pred_check_branch
          %417 = sbr.rel (%p415) target = $region20
        $region19: #{tpu_custom_call.1} parent=11 // pred_region
          _
        $region20: #{tpu_custom_call.1} parent=11 // pred_fallthru
          _
      $region12: #{tpu_custom_call.1} parent=5 // pred_fallthru
        _
      %p418 = scmp.lt.s32.totalorder %s20, 2
      // Predicated region
      $region21: #{tpu_custom_call.1} parent=5 // pred_check
        %p419 = pneg %p418
      $region22: #{tpu_custom_call.1} parent=5 // pred_check_branch
        %421 = sbr.rel (%p419) target = $region24
      $region23: #{tpu_custom_call.1} parent=5 // pred_region
        // Predicated region
        $region25: #{tpu_custom_call.1} parent=23 // pred_check
          %p422 = pneg %p99
        $region26: #{tpu_custom_call.1} parent=23 // pred_check_branch
          %424 = sbr.rel (%p422) target = $region28
        $region27: #{tpu_custom_call.1} parent=23 // pred_region
          %p425 = scmp.lt.s32.totalorder %s28, 1
          %s426 = scalar_select %p425, %s28, 1
          %s427 = smul.addr %s426, 4
          %s428 = scalar_lea.vmem %s2, %s427
        $region28: #{tpu_custom_call.1} parent=23 // pred_fallthru
          _
        // Predicated region
        $region29: #{tpu_custom_call.1} parent=23 // pred_check
          %p429 = pneg %p125
        $region30: #{tpu_custom_call.1} parent=23 // pred_check_branch
          %431 = sbr.rel (%p429) target = $region32
        $region31: #{tpu_custom_call.1} parent=23 // pred_region
          %p432 = scmp.lt.s32.totalorder %s28, 1
          %s433 = scalar_select %p432, %s28, 1
          %s434 = smul.addr %s433, 4
          %s435 = smul.addr %s434, 4
          %s436 = scalar_lea.vmem %s3, %s435
        $region32: #{tpu_custom_call.1} parent=23 // pred_fallthru
          _
        // Predicated region
        $region33: #{tpu_custom_call.1} parent=23 // pred_check
          %p437 = pneg %p151
        $region34: #{tpu_custom_call.1} parent=23 // pred_check_branch
          %439 = sbr.rel (%p437) target = $region36
        $region35: #{tpu_custom_call.1} parent=23 // pred_region
          %p440 = scmp.lt.s32.totalorder %s28, 1
          %s441 = scalar_select %p440, %s28, 1
          %s442 = scalar_lea.vmem %s4, %s441
        $region36: #{tpu_custom_call.1} parent=23 // pred_fallthru
          _
        // Predicated region
        $region37: #{tpu_custom_call.1} parent=23 // pred_check
          %p443 = pneg %p177
        $region38: #{tpu_custom_call.1} parent=23 // pred_check_branch
          %445 = sbr.rel (%p443) target = $region40
        $region39: #{tpu_custom_call.1} parent=23 // pred_region
          %p446 = scmp.lt.s32.totalorder %s28, 1
          %s447 = scalar_select %p446, %s28, 1
          %s448 = scalar_lea.vmem %s5, %s447
        $region40: #{tpu_custom_call.1} parent=23 // pred_fallthru
          _
        // Predicated region
        $region41: #{tpu_custom_call.1} parent=23 // pred_check
          %p449 = pneg %p203
        $region42: #{tpu_custom_call.1} parent=23 // pred_check_branch
          %451 = sbr.rel (%p449) target = $region44
        $region43: #{tpu_custom_call.1} parent=23 // pred_region
          %p452 = scmp.lt.s32.totalorder %s28, 1
          %s453 = scalar_select %p452, %s28, 1
          %s454 = scalar_lea.vmem %s6, %s453
        $region44: #{tpu_custom_call.1} parent=23 // pred_fallthru
          _
        // Predicated region
        $region45: #{tpu_custom_call.1} parent=23 // pred_check
          %p455 = pneg %p229
        $region46: #{tpu_custom_call.1} parent=23 // pred_check_branch
          %457 = sbr.rel (%p455) target = $region48
        $region47: #{tpu_custom_call.1} parent=23 // pred_region
          %p458 = scmp.lt.s32.totalorder %s28, 1
          %s459 = scalar_select %p458, %s28, 1
          %s460 = smul.addr %s459, 4
          %s461 = smul.addr %s460, 4
          %s462 = scalar_lea.vmem %s7, %s461
        $region48: #{tpu_custom_call.1} parent=23 // pred_fallthru
          _
        // Predicated region
        $region49: #{tpu_custom_call.1} parent=23 // pred_check
          %p463 = pneg %p255
        $region50: #{tpu_custom_call.1} parent=23 // pred_check_branch
          %465 = sbr.rel (%p463) target = $region52
        $region51: #{tpu_custom_call.1} parent=23 // pred_region
          %p466 = scmp.lt.s32.totalorder %s28, 1
          %s467 = scalar_select %p466, %s28, 1
          %s468 = scalar_lea.vmem %s8, %s467
        $region52: #{tpu_custom_call.1} parent=23 // pred_fallthru
          _
        // Predicated region
        $region53: #{tpu_custom_call.1} parent=23 // pred_check
          %p469 = pneg %p281
        $region54: #{tpu_custom_call.1} parent=23 // pred_check_branch
          %471 = sbr.rel (%p469) target = $region56
        $region55: #{tpu_custom_call.1} parent=23 // pred_region
          %p472 = scmp.lt.s32.totalorder %s28, 1
          %s473 = scalar_select %p472, %s28, 1
          %s474 = smul.addr %s473, 16
          %s475 = smul.addr %s474, 4
          %s476 = scalar_lea.vmem %s9, %s475
        $region56: #{tpu_custom_call.1} parent=23 // pred_fallthru
          _
        // Predicated region
        $region57: #{tpu_custom_call.1} parent=23 // pred_check
          %p477 = pneg %p307
        $region58: #{tpu_custom_call.1} parent=23 // pred_check_branch
          %479 = sbr.rel (%p477) target = $region60
        $region59: #{tpu_custom_call.1} parent=23 // pred_region
          %p480 = scmp.lt.s32.totalorder %s28, 1
          %s481 = scalar_select %p480, %s28, 1
          %s482 = scalar_lea.vmem %s10, %s481
        $region60: #{tpu_custom_call.1} parent=23 // pred_fallthru
          _
        // Predicated region
        $region61: #{tpu_custom_call.1} parent=23 // pred_check
          %p483 = pneg %p333
        $region62: #{tpu_custom_call.1} parent=23 // pred_check_branch
          %485 = sbr.rel (%p483) target = $region64
        $region63: #{tpu_custom_call.1} parent=23 // pred_region
          %p486 = scmp.lt.s32.totalorder %s28, 1
          %s487 = scalar_select %p486, %s28, 1
          %s488 = scalar_lea.vmem %s11, %s487
        $region64: #{tpu_custom_call.1} parent=23 // pred_fallthru
          _
        // Predicated region
        $region65: #{tpu_custom_call.1} parent=23 // pred_check
          %p489 = pneg %p359
        $region66: #{tpu_custom_call.1} parent=23 // pred_check_branch
          %491 = sbr.rel (%p489) target = $region68
        $region67: #{tpu_custom_call.1} parent=23 // pred_region
          %p492 = scmp.lt.s32.totalorder %s28, 1
          %s493 = scalar_select %p492, %s28, 1
          %s494 = scalar_lea.vmem %s12, %s493
        $region68: #{tpu_custom_call.1} parent=23 // pred_fallthru
          _
      $region24: #{tpu_custom_call.1} parent=5 // pred_fallthru
        _
      %p495 = scmp.le.s32.totalorder 1, %s20
      %p496 = scmp.lt.s32.totalorder %s20, 3
      %p497 = pnand %p495, %p496
      %p498 = pneg %p497
      // Predicated region
      $region69: #{tpu_custom_call.1} parent=5 // pred_check
        _
      $region70: #{tpu_custom_call.1} parent=5 // pred_check_branch
        %500 = sbr.rel (%p497) target = $region72
      $region71: #{tpu_custom_call.1} parent=5 // pred_region
        %s501 = ssub.s32 %s20, 1
        %s502 = smul.u32 2, %s29
        %p503 = scmp.lt.s32.totalorder %s502, 1
        %s504 = scalar_select %p503, %s502, 1
        %s505 = smul.addr %s504, 8
        %s506 = scalar_lea.vmem %s0, %s505
        %p507 = pneg %p58
        %p508 = pneg %p55
        %p509 = pneg %p79
        %p510 = pneg %p76
        %p511 = scmp.lt.s32.totalorder %s30, 1
        %s512 = scalar_select %p511, %s30, 1
        %s513 = smul.addr %s512, 4
        %s514 = scalar_lea.vmem %s2, %s513
        %p515 = pneg %p105
        %p516 = pneg %p102
        %p517 = scmp.lt.s32.totalorder %s30, 1
        %s518 = scalar_select %p517, %s30, 1
        %s519 = smul.addr %s518, 4
        %s520 = smul.addr %s519, 4
        %s521 = scalar_lea.vmem %s3, %s520
        %p522 = pneg %p131
        %p523 = pneg %p128
        %p524 = scmp.lt.s32.totalorder %s30, 1
        %s525 = scalar_select %p524, %s30, 1
        %s526 = scalar_lea.vmem %s4, %s525
        %p527 = pneg %p157
        %p528 = pneg %p154
        %p529 = scmp.lt.s32.totalorder %s30, 1
        %s530 = scalar_select %p529, %s30, 1
        %s531 = scalar_lea.vmem %s5, %s530
        %p532 = pneg %p183
        %p533 = pneg %p180
        %p534 = scmp.lt.s32.totalorder %s30, 1
        %s535 = scalar_select %p534, %s30, 1
        %s536 = scalar_lea.vmem %s6, %s535
        %p537 = pneg %p209
        %p538 = pneg %p206
        %p539 = scmp.lt.s32.totalorder %s30, 1
        %s540 = scalar_select %p539, %s30, 1
        %s541 = smul.addr %s540, 4
        %s542 = smul.addr %s541, 4
        %s543 = scalar_lea.vmem %s7, %s542
        %p544 = pneg %p235
        %p545 = pneg %p232
        %p546 = scmp.lt.s32.totalorder %s30, 1
        %s547 = scalar_select %p546, %s30, 1
        %s548 = scalar_lea.vmem %s8, %s547
        %p549 = pneg %p261
        %p550 = pneg %p258
        %p551 = scmp.lt.s32.totalorder %s30, 1
        %s552 = scalar_select %p551, %s30, 1
        %s553 = smul.addr %s552, 16
        %s554 = smul.addr %s553, 4
        %s555 = scalar_lea.vmem %s9, %s554
        %p556 = pneg %p287
        %p557 = pneg %p284
        %p558 = scmp.lt.s32.totalorder %s30, 1
        %s559 = scalar_select %p558, %s30, 1
        %s560 = scalar_lea.vmem %s10, %s559
        %p561 = pneg %p313
        %p562 = pneg %p310
        %p563 = scmp.lt.s32.totalorder %s30, 1
        %s564 = scalar_select %p563, %s30, 1
        %s565 = scalar_lea.vmem %s11, %s564
        %p566 = pneg %p339
        %p567 = pneg %p336
        %p568 = scmp.lt.s32.totalorder %s30, 1
        %s569 = scalar_select %p568, %s30, 1
        %s570 = scalar_lea.vmem %s12, %s569
        %p571 = pneg %p365
        %p572 = pneg %p362
        %p573 = pneg %p391
        %p574 = pneg %p388
        %s575 = smul.u32 2, %s29
        %p576 = scmp.lt.s32.totalorder %s575, 1
        %s577 = scalar_select %p576, %s575, 1
        %s578 = smul.addr %s577, 8
        %s579 = scalar_lea.vmem %s0, %s578
        %s580 = smul.u32 2, %s29
        %p581 = scmp.lt.s32.totalorder %s30, 1
        %s582 = scalar_select %p581, %s30, 1
        %s583 = smul.addr %s582, 4
        %s584 = scalar_lea.vmem %s2, %s583
        %p585 = scmp.lt.s32.totalorder %s30, 1
        %s586 = scalar_select %p585, %s30, 1
        %s587 = smul.addr %s586, 4
        %s588 = smul.addr %s587, 4
        %s589 = scalar_lea.vmem %s3, %s588
        %p590 = scmp.lt.s32.totalorder %s30, 1
        %s591 = scalar_select %p590, %s30, 1
        %s592 = scalar_lea.vmem %s4, %s591
        %p593 = scmp.lt.s32.totalorder %s30, 1
        %s594 = scalar_select %p593, %s30, 1
        %s595 = scalar_lea.vmem %s5, %s594
        %p596 = scmp.lt.s32.totalorder %s30, 1
        %s597 = scalar_select %p596, %s30, 1
        %s598 = scalar_lea.vmem %s6, %s597
        %p599 = scmp.lt.s32.totalorder %s30, 1
        %s600 = scalar_select %p599, %s30, 1
        %s601 = smul.addr %s600, 4
        %s602 = smul.addr %s601, 4
        %s603 = scalar_lea.vmem %s7, %s602
        %p604 = scmp.lt.s32.totalorder %s30, 1
        %s605 = scalar_select %p604, %s30, 1
        %s606 = scalar_lea.vmem %s8, %s605
        %p607 = scmp.lt.s32.totalorder %s30, 1
        %s608 = scalar_select %p607, %s30, 1
        %s609 = smul.addr %s608, 16
        %s610 = smul.addr %s609, 4
        %s611 = scalar_lea.vmem %s9, %s610
        %p612 = scmp.lt.s32.totalorder %s30, 1
        %s613 = scalar_select %p612, %s30, 1
        %s614 = scalar_lea.vmem %s10, %s613
        %p615 = scmp.lt.s32.totalorder %s30, 1
        %s616 = scalar_select %p615, %s30, 1
        %s617 = scalar_lea.vmem %s11, %s616
        %p618 = scmp.lt.s32.totalorder %s30, 1
        %s619 = scalar_select %p618, %s30, 1
        %s620 = scalar_lea.vmem %s12, %s619
        %s621 = smul.u32 2, %s29
        %p623 = scmp.eq.s32.totalorder %s30, 0
        // Predicated region
        $region73: #{tpu_custom_call.1} parent=71 // pred_check
          %p624 = pneg %p623
        $region74: #{tpu_custom_call.1} parent=71 // pred_check_branch
          %626 = sbr.rel (%p624) target = $region76
        $region75: #{tpu_custom_call.1} parent=71 // pred_region
          %v627 = vld [vmem:[%s579] sm:$0xff]
          %v628 = vld [vmem:[%s579 + $0x8] sm:$0xff]
          %v629 = vld [vmem:[%s1] sm:$0x1]
          %v631 = vlaneseq
          %v632 = vshrl.u32 %v631, 7
          %v633 = vsub.s32 0, %v632
          %v634 = vrot.slane %v629, %v633
          %v636 = vadd.f32 %v627, %v634
          %v637 = vadd.f32 %v628, %v634
          %vm638 = vcmask 261120
          %639 = vst.msk [vmem:[#allocation2] sm:$0xff] %vm638, %v636
          %640 = vst.msk [vmem:[#allocation2 + $0x8] sm:$0xff] %vm638, %v637
        $region76: #{tpu_custom_call.1} parent=71 // pred_fallthru
          _
        %v641 = vld [vmem:[#allocation2] sm:$0xff]
        %v642 = vld [vmem:[#allocation2 + $0x8] sm:$0xff]
        %645 = vrot.lane.b32.xlu0 %v641, 120
        %v646 = vpop.permute.xlu0 %645
        %647 = vrot.lane.b32.xlu0 %v642, 120
        %v648 = vpop.permute.xlu0 %647
        %651 = vrot.lane.b32.xlu0 %v641, 112
        %v652 = vpop.permute.xlu0 %651
        %653 = vrot.lane.b32.xlu0 %v642, 112
        %v654 = vpop.permute.xlu0 %653
        %657 = vrot.lane.b32.xlu0 %v641, 104
        %v658 = vpop.permute.xlu0 %657
        %659 = vrot.lane.b32.xlu0 %v642, 104
        %v660 = vpop.permute.xlu0 %659
        %v663 = vpack.c.bf16 %v642, %v641
        %v664 = vpack.c.bf16 %v648, %v646
        %v665 = vpack.c.bf16 %v654, %v652
        %v666 = vpack.c.bf16 %v660, %v658
        %v667 = vld [vmem:[%s584] sm:$0xf]
        %vm668 = vcmask 64512
        %v670 = vsel %vm668, %v663, 0
        %v673 = vsel %vm668, %v664, 0
        %v676 = vsel %vm668, %v665, 0
        %v679 = vsel %vm668, %v666, 0
        %vm681 = vcmask 1043456
        %v683 = vsel %vm681, %v667, 0
        %685 = vmatprep.subr.bf16.mxu0 0
        %686 = vmatpush1.bf16.msra.mxu0 %v683
        %687 = vmatprep.subr.bf16.mxu0 0
        %688 = vmatpush1.bf16.msra.mxu0 0
        %689 = vmatprep.subr.bf16.mxu0 0
        %690 = vmatpush1.bf16.msra.mxu0 0
        %691 = vmatprep.subr.bf16.mxu0 0
        %692 = vmatpush1.bf16.msra.mxu0 0
        %693 = vmatprep.subr.bf16.mxu0 0
        %694 = vmatpush1.bf16.msra.mxu0 0
        %695 = vmatprep.subr.bf16.mxu0 0
        %696 = vmatpush1.bf16.msra.mxu0 0
        %697 = vmatprep.subr.bf16.mxu0 0
        %698 = vmatpush1.bf16.msra.mxu0 0
        %699 = vmatprep.subr.bf16.mxu0 0
        %700 = vmatpush1.bf16.msra.mxu0 0
        %701 = vmatprep.subr.bf16.mxu0 0
        %702 = vmatpush1.bf16.msra.mxu0 0
        %703 = vmatprep.subr.bf16.mxu0 0
        %704 = vmatpush1.bf16.msra.mxu0 0
        %705 = vmatprep.subr.bf16.mxu0 0
        %706 = vmatpush1.bf16.msra.mxu0 0
        %707 = vmatprep.subr.bf16.mxu0 0
        %708 = vmatpush1.bf16.msra.mxu0 0
        %709 = vmatprep.subr.bf16.mxu0 0
        %710 = vmatpush1.bf16.msra.mxu0 0
        %711 = vmatprep.subr.bf16.mxu0 0
        %712 = vmatpush1.bf16.msra.mxu0 0
        %713 = vmatprep.subr.bf16.mxu0 0
        %714 = vmatpush1.bf16.msra.mxu0 0
        %715 = vmatprep.subr.bf16.mxu0 0
        %716 = vmatpush1.bf16.msra.mxu0 0
        %717 = vmatprep.mubr.bf16.mxu0 0
        %718 = vmatmul.mubr.bf16.gmra.mrb[0].mxu0 %v670
        %v719 = vpop.f32.mrb[0].mxu0
        %v720 = vadd.f32 0.0, %v719
        %v721 = vpop.f32.mrb[0].mxu0
        %v722 = vpop.f32.mrb[0].mxu0
        %v723 = vadd.f32 0.0, %v722
        %v724 = vpop.f32.mrb[0].mxu0
        %725 = vmatprep.mubr.bf16.mxu0 0
        %726 = vmatmul.mubr.bf16.gmra.mrb[0].mxu0 %v673
        %v727 = vpop.f32.mrb[0].mxu0
        %v728 = vadd.f32 0.0, %v727
        %v729 = vpop.f32.mrb[0].mxu0
        %v730 = vpop.f32.mrb[0].mxu0
        %v731 = vadd.f32 0.0, %v730
        %v732 = vpop.f32.mrb[0].mxu0
        %733 = vmatprep.mubr.bf16.mxu0 0
        %734 = vmatmul.mubr.bf16.gmra.mrb[0].mxu0 %v676
        %v735 = vpop.f32.mrb[0].mxu0
        %v736 = vadd.f32 0.0, %v735
        %v737 = vpop.f32.mrb[0].mxu0
        %v738 = vpop.f32.mrb[0].mxu0
        %v739 = vadd.f32 0.0, %v738
        %v740 = vpop.f32.mrb[0].mxu0
        %741 = vmatprep.mubr.bf16.mxu0 0
        %742 = vmatmul.mubr.bf16.gmra.mrb[0].mxu0 %v679
        %v743 = vpop.f32.mrb[0].mxu0
        %v744 = vadd.f32 0.0, %v743
        %v745 = vpop.f32.mrb[0].mxu0
        %v746 = vpop.f32.mrb[0].mxu0
        %v747 = vadd.f32 0.0, %v746
        %v748 = vpop.f32.mrb[0].mxu0
        %749 = vdwg.mxu0
        %v750 = vpack.c.bf16 %v720, %v720
        %v751 = vpack.c.bf16 %v723, %v723
        %v752 = vpack.c.bf16 %v728, %v728
        %v753 = vpack.c.bf16 %v731, %v731
        %v754 = vpack.c.bf16 %v736, %v736
        %v755 = vpack.c.bf16 %v739, %v739
        %v756 = vpack.c.bf16 %v744, %v744
        %v757 = vpack.c.bf16 %v747, %v747
        %759 = vrot.lane.b32.xlu0 %v750, 120
        %v760 = vpop.permute.xlu0 %759
        %v762 = vsel %vm668, %v750, 0
        %v765 = vsel %vm668, %v760, 0
        %767 = vmatprep.subr.bf16.mxu0 0
        %768 = vmatpush1.bf16.xpose.msra.mxu0 %v765
        %769 = vmatprep.subr.bf16.mxu0 0
        %770 = vmatpush1.bf16.xpose.msra.mxu0 0
        %771 = vmatprep.subr.bf16.mxu0 0
        %772 = vmatpush1.bf16.xpose.msra.mxu0 0
        %773 = vmatprep.subr.bf16.mxu0 0
        %774 = vmatpush1.bf16.xpose.msra.mxu0 0
        %775 = vmatprep.subr.bf16.mxu0 0
        %776 = vmatpush1.bf16.xpose.msra.mxu0 0
        %777 = vmatprep.subr.bf16.mxu0 0
        %778 = vmatpush1.bf16.xpose.msra.mxu0 0
        %779 = vmatprep.subr.bf16.mxu0 0
        %780 = vmatpush1.bf16.xpose.msra.mxu0 0
        %781 = vmatprep.subr.bf16.mxu0 0
        %782 = vmatpush1.bf16.xpose.msra.mxu0 0
        %783 = vmatprep.subr.bf16.mxu0 0
        %784 = vmatpush1.bf16.xpose.msra.mxu0 0
        %785 = vmatprep.subr.bf16.mxu0 0
        %786 = vmatpush1.bf16.xpose.msra.mxu0 0
        %787 = vmatprep.subr.bf16.mxu0 0
        %788 = vmatpush1.bf16.xpose.msra.mxu0 0
        %789 = vmatprep.subr.bf16.mxu0 0
        %790 = vmatpush1.bf16.xpose.msra.mxu0 0
        %791 = vmatprep.subr.bf16.mxu0 0
        %792 = vmatpush1.bf16.xpose.msra.mxu0 0
        %793 = vmatprep.subr.bf16.mxu0 0
        %794 = vmatpush1.bf16.xpose.msra.mxu0 0
        %795 = vmatprep.subr.bf16.mxu0 0
        %796 = vmatpush1.bf16.xpose.msra.mxu0 0
        %797 = vmatprep.subr.bf16.mxu0 0
        %798 = vmatpush1.bf16.xpose.msra.mxu0 0
        %799 = vmatprep.mubr.bf16.mxu0 0
        %800 = vmatmul.mubr.bf16.gmra.mrb[0].mxu0 %v762
        %v801 = vpop.f32.mrb[0].mxu0
        %v802 = vadd.f32 0.0, %v801
        %v803 = vpop.f32.mrb[0].mxu0
        %v804 = vpop.f32.mrb[0].mxu0
        %v805 = vpop.f32.mrb[0].mxu0
        %806 = vdwg.mxu0
        %808 = vrot.lane.b32.xlu0 %v751, 120
        %v809 = vpop.permute.xlu0 %808
        %v811 = vsel %vm668, %v751, 0
        %v814 = vsel %vm668, %v809, 0
        %816 = vmatprep.subr.bf16.mxu0 0
        %817 = vmatpush1.bf16.xpose.msra.mxu0 %v814
        %818 = vmatprep.subr.bf16.mxu0 0
        %819 = vmatpush1.bf16.xpose.msra.mxu0 0
        %820 = vmatprep.subr.bf16.mxu0 0
        %821 = vmatpush1.bf16.xpose.msra.mxu0 0
        %822 = vmatprep.subr.bf16.mxu0 0
        %823 = vmatpush1.bf16.xpose.msra.mxu0 0
        %824 = vmatprep.subr.bf16.mxu0 0
        %825 = vmatpush1.bf16.xpose.msra.mxu0 0
        %826 = vmatprep.subr.bf16.mxu0 0
        %827 = vmatpush1.bf16.xpose.msra.mxu0 0
        %828 = vmatprep.subr.bf16.mxu0 0
        %829 = vmatpush1.bf16.xpose.msra.mxu0 0
        %830 = vmatprep.subr.bf16.mxu0 0
        %831 = vmatpush1.bf16.xpose.msra.mxu0 0
        %832 = vmatprep.subr.bf16.mxu0 0
        %833 = vmatpush1.bf16.xpose.msra.mxu0 0
        %834 = vmatprep.subr.bf16.mxu0 0
        %835 = vmatpush1.bf16.xpose.msra.mxu0 0
        %836 = vmatprep.subr.bf16.mxu0 0
        %837 = vmatpush1.bf16.xpose.msra.mxu0 0
        %838 = vmatprep.subr.bf16.mxu0 0
        %839 = vmatpush1.bf16.xpose.msra.mxu0 0
        %840 = vmatprep.subr.bf16.mxu0 0
        %841 = vmatpush1.bf16.xpose.msra.mxu0 0
        %842 = vmatprep.subr.bf16.mxu0 0
        %843 = vmatpush1.bf16.xpose.msra.mxu0 0
        %844 = vmatprep.subr.bf16.mxu0 0
        %845 = vmatpush1.bf16.xpose.msra.mxu0 0
        %846 = vmatprep.subr.bf16.mxu0 0
        %847 = vmatpush1.bf16.xpose.msra.mxu0 0
        %848 = vmatprep.mubr.bf16.mxu0 0
        %849 = vmatmul.mubr.bf16.gmra.mrb[0].mxu0 %v811
        %v850 = vpop.f32.mrb[0].mxu0
        %v851 = vadd.f32 0.0, %v850
        %v852 = vpop.f32.mrb[0].mxu0
        %v853 = vpop.f32.mrb[0].mxu0
        %v854 = vpop.f32.mrb[0].mxu0
        %855 = vdwg.mxu0
        %857 = vrot.lane.b32.xlu0 %v752, 120
        %v858 = vpop.permute.xlu0 %857
        %v860 = vsel %vm668, %v752, 0
        %v863 = vsel %vm668, %v858, 0
        %865 = vmatprep.subr.bf16.mxu0 0
        %866 = vmatpush1.bf16.xpose.msra.mxu0 %v863
        %867 = vmatprep.subr.bf16.mxu0 0
        %868 = vmatpush1.bf16.xpose.msra.mxu0 0
        %869 = vmatprep.subr.bf16.mxu0 0
        %870 = vmatpush1.bf16.xpose.msra.mxu0 0
        %871 = vmatprep.subr.bf16.mxu0 0
        %872 = vmatpush1.bf16.xpose.msra.mxu0 0
        %873 = vmatprep.subr.bf16.mxu0 0
        %874 = vmatpush1.bf16.xpose.msra.mxu0 0
        %875 = vmatprep.subr.bf16.mxu0 0
        %876 = vmatpush1.bf16.xpose.msra.mxu0 0
        %877 = vmatprep.subr.bf16.mxu0 0
        %878 = vmatpush1.bf16.xpose.msra.mxu0 0
        %879 = vmatprep.subr.bf16.mxu0 0
        %880 = vmatpush1.bf16.xpose.msra.mxu0 0
        %881 = vmatprep.subr.bf16.mxu0 0
        %882 = vmatpush1.bf16.xpose.msra.mxu0 0
        %883 = vmatprep.subr.bf16.mxu0 0
        %884 = vmatpush1.bf16.xpose.msra.mxu0 0
        %885 = vmatprep.subr.bf16.mxu0 0
        %886 = vmatpush1.bf16.xpose.msra.mxu0 0
        %887 = vmatprep.subr.bf16.mxu0 0
        %888 = vmatpush1.bf16.xpose.msra.mxu0 0
        %889 = vmatprep.subr.bf16.mxu0 0
        %890 = vmatpush1.bf16.xpose.msra.mxu0 0
        %891 = vmatprep.subr.bf16.mxu0 0
        %892 = vmatpush1.bf16.xpose.msra.mxu0 0
        %893 = vmatprep.subr.bf16.mxu0 0
        %894 = vmatpush1.bf16.xpose.msra.mxu0 0
        %895 = vmatprep.subr.bf16.mxu0 0
        %896 = vmatpush1.bf16.xpose.msra.mxu0 0
        %897 = vmatprep.mubr.bf16.mxu0 0
        %898 = vmatmul.mubr.bf16.gmra.mrb[0].mxu0 %v860
        %v899 = vpop.f32.mrb[0].mxu0
        %v900 = vadd.f32 0.0, %v899
        %v901 = vpop.f32.mrb[0].mxu0
        %v902 = vpop.f32.mrb[0].mxu0
        %v903 = vpop.f32.mrb[0].mxu0
        %904 = vdwg.mxu0
        %906 = vrot.lane.b32.xlu0 %v753, 120
        %v907 = vpop.permute.xlu0 %906
        %v909 = vsel %vm668, %v753, 0
        %v912 = vsel %vm668, %v907, 0
        %914 = vmatprep.subr.bf16.mxu0 0
        %915 = vmatpush1.bf16.xpose.msra.mxu0 %v912
        %916 = vmatprep.subr.bf16.mxu0 0
        %917 = vmatpush1.bf16.xpose.msra.mxu0 0
        %918 = vmatprep.subr.bf16.mxu0 0
        %919 = vmatpush1.bf16.xpose.msra.mxu0 0
        %920 = vmatprep.subr.bf16.mxu0 0
        %921 = vmatpush1.bf16.xpose.msra.mxu0 0
        %922 = vmatprep.subr.bf16.mxu0 0
        %923 = vmatpush1.bf16.xpose.msra.mxu0 0
        %924 = vmatprep.subr.bf16.mxu0 0
        %925 = vmatpush1.bf16.xpose.msra.mxu0 0
        %926 = vmatprep.subr.bf16.mxu0 0
        %927 = vmatpush1.bf16.xpose.msra.mxu0 0
        %928 = vmatprep.subr.bf16.mxu0 0
        %929 = vmatpush1.bf16.xpose.msra.mxu0 0
        %930 = vmatprep.subr.bf16.mxu0 0
        %931 = vmatpush1.bf16.xpose.msra.mxu0 0
        %932 = vmatprep.subr.bf16.mxu0 0
        %933 = vmatpush1.bf16.xpose.msra.mxu0 0
        %934 = vmatprep.subr.bf16.mxu0 0
        %935 = vmatpush1.bf16.xpose.msra.mxu0 0
        %936 = vmatprep.subr.bf16.mxu0 0
        %937 = vmatpush1.bf16.xpose.msra.mxu0 0
        %938 = vmatprep.subr.bf16.mxu0 0
        %939 = vmatpush1.bf16.xpose.msra.mxu0 0
        %940 = vmatprep.subr.bf16.mxu0 0
        %941 = vmatpush1.bf16.xpose.msra.mxu0 0
        %942 = vmatprep.subr.bf16.mxu0 0
        %943 = vmatpush1.bf16.xpose.msra.mxu0 0
        %944 = vmatprep.subr.bf16.mxu0 0
        %945 = vmatpush1.bf16.xpose.msra.mxu0 0
        %946 = vmatprep.mubr.bf16.mxu0 0
        %947 = vmatmul.mubr.bf16.gmra.mrb[0].mxu0 %v909
        %v948 = vpop.f32.mrb[0].mxu0
        %v949 = vadd.f32 0.0, %v948
        %v950 = vpop.f32.mrb[0].mxu0
        %v951 = vpop.f32.mrb[0].mxu0
        %v952 = vpop.f32.mrb[0].mxu0
        %953 = vdwg.mxu0
        %955 = vrot.lane.b32.xlu0 %v754, 120
        %v956 = vpop.permute.xlu0 %955
        %v958 = vsel %vm668, %v754, 0
        %v961 = vsel %vm668, %v956, 0
        %963 = vmatprep.subr.bf16.mxu0 0
        %964 = vmatpush1.bf16.xpose.msra.mxu0 %v961
        %965 = vmatprep.subr.bf16.mxu0 0
        %966 = vmatpush1.bf16.xpose.msra.mxu0 0
        %967 = vmatprep.subr.bf16.mxu0 0
        %968 = vmatpush1.bf16.xpose.msra.mxu0 0
        %969 = vmatprep.subr.bf16.mxu0 0
        %970 = vmatpush1.bf16.xpose.msra.mxu0 0
        %971 = vmatprep.subr.bf16.mxu0 0
        %972 = vmatpush1.bf16.xpose.msra.mxu0 0
        %973 = vmatprep.subr.bf16.mxu0 0
        %974 = vmatpush1.bf16.xpose.msra.mxu0 0
        %975 = vmatprep.subr.bf16.mxu0 0
        %976 = vmatpush1.bf16.xpose.msra.mxu0 0
        %977 = vmatprep.subr.bf16.mxu0 0
        %978 = vmatpush1.bf16.xpose.msra.mxu0 0
        %979 = vmatprep.subr.bf16.mxu0 0
        %980 = vmatpush1.bf16.xpose.msra.mxu0 0
        %981 = vmatprep.subr.bf16.mxu0 0
        %982 = vmatpush1.bf16.xpose.msra.mxu0 0
        %983 = vmatprep.subr.bf16.mxu0 0
        %984 = vmatpush1.bf16.xpose.msra.mxu0 0
        %985 = vmatprep.subr.bf16.mxu0 0
        %986 = vmatpush1.bf16.xpose.msra.mxu0 0
        %987 = vmatprep.subr.bf16.mxu0 0
        %988 = vmatpush1.bf16.xpose.msra.mxu0 0
        %989 = vmatprep.subr.bf16.mxu0 0
        %990 = vmatpush1.bf16.xpose.msra.mxu0 0
        %991 = vmatprep.subr.bf16.mxu0 0
        %992 = vmatpush1.bf16.xpose.msra.mxu0 0
        %993 = vmatprep.subr.bf16.mxu0 0
        %994 = vmatpush1.bf16.xpose.msra.mxu0 0
        %995 = vmatprep.mubr.bf16.mxu0 0
        %996 = vmatmul.mubr.bf16.gmra.mrb[0].mxu0 %v958
        %v997 = vpop.f32.mrb[0].mxu0
        %v998 = vadd.f32 0.0, %v997
        %v999 = vpop.f32.mrb[0].mxu0
        %v1000 = vpop.f32.mrb[0].mxu0
        %v1001 = vpop.f32.mrb[0].mxu0
        %1002 = vdwg.mxu0
        %1004 = vrot.lane.b32.xlu0 %v755, 120
        %v1005 = vpop.permute.xlu0 %1004
        %v1007 = vsel %vm668, %v755, 0
        %v1010 = vsel %vm668, %v1005, 0
        %1012 = vmatprep.subr.bf16.mxu0 0
        %1013 = vmatpush1.bf16.xpose.msra.mxu0 %v1010
        %1014 = vmatprep.subr.bf16.mxu0 0
        %1015 = vmatpush1.bf16.xpose.msra.mxu0 0
        %1016 = vmatprep.subr.bf16.mxu0 0
        %1017 = vmatpush1.bf16.xpose.msra.mxu0 0
        %1018 = vmatprep.subr.bf16.mxu0 0
        %1019 = vmatpush1.bf16.xpose.msra.mxu0 0
        %1020 = vmatprep.subr.bf16.mxu0 0
        %1021 = vmatpush1.bf16.xpose.msra.mxu0 0
        %1022 = vmatprep.subr.bf16.mxu0 0
        %1023 = vmatpush1.bf16.xpose.msra.mxu0 0
        %1024 = vmatprep.subr.bf16.mxu0 0
        %1025 = vmatpush1.bf16.xpose.msra.mxu0 0
        %1026 = vmatprep.subr.bf16.mxu0 0
        %1027 = vmatpush1.bf16.xpose.msra.mxu0 0
        %1028 = vmatprep.subr.bf16.mxu0 0
        %1029 = vmatpush1.bf16.xpose.msra.mxu0 0
        %1030 = vmatprep.subr.bf16.mxu0 0
        %1031 = vmatpush1.bf16.xpose.msra.mxu0 0
        %1032 = vmatprep.subr.bf16.mxu0 0
        %1033 = vmatpush1.bf16.xpose.msra.mxu0 0
        %1034 = vmatprep.subr.bf16.mxu0 0
        %1035 = vmatpush1.bf16.xpose.msra.mxu0 0
        %1036 = vmatprep.subr.bf16.mxu0 0
        %1037 = vmatpush1.bf16.xpose.msra.mxu0 0
        %1038 = vmatprep.subr.bf16.mxu0 0
        %1039 = vmatpush1.bf16.xpose.msra.mxu0 0
        %1040 = vmatprep.subr.bf16.mxu0 0
        %1041 = vmatpush1.bf16.xpose.msra.mxu0 0
        %1042 = vmatprep.subr.bf16.mxu0 0
        %1043 = vmatpush1.bf16.xpose.msra.mxu0 0
        %1044 = vmatprep.mubr.bf16.mxu0 0
        %1045 = vmatmul.mubr.bf16.gmra.mrb[0].mxu0 %v1007
        %v1046 = vpop.f32.mrb[0].mxu0
        %v1047 = vadd.f32 0.0, %v1046
        %v1048 = vpop.f32.mrb[0].mxu0
        %v1049 = vpop.f32.mrb[0].mxu0
        %v1050 = vpop.f32.mrb[0].mxu0
        %1051 = vdwg.mxu0
        %1053 = vrot.lane.b32.xlu0 %v756, 120
        %v1054 = vpop.permute.xlu0 %1053
        %v1056 = vsel %vm668, %v756, 0
        %v1059 = vsel %vm668, %v1054, 0
        %1061 = vmatprep.subr.bf16.mxu0 0
        %1062 = vmatpush1.bf16.xpose.msra.mxu0 %v1059
        %1063 = vmatprep.subr.bf16.mxu0 0
        %1064 = vmatpush1.bf16.xpose.msra.mxu0 0
        %1065 = vmatprep.subr.bf16.mxu0 0
        %1066 = vmatpush1.bf16.xpose.msra.mxu0 0
        %1067 = vmatprep.subr.bf16.mxu0 0
        %1068 = vmatpush1.bf16.xpose.msra.mxu0 0
        %1069 = vmatprep.subr.bf16.mxu0 0
        %1070 = vmatpush1.bf16.xpose.msra.mxu0 0
        %1071 = vmatprep.subr.bf16.mxu0 0
        %1072 = vmatpush1.bf16.xpose.msra.mxu0 0
        %1073 = vmatprep.subr.bf16.mxu0 0
        %1074 = vmatpush1.bf16.xpose.msra.mxu0 0
        %1075 = vmatprep.subr.bf16.mxu0 0
        %1076 = vmatpush1.bf16.xpose.msra.mxu0 0
        %1077 = vmatprep.subr.bf16.mxu0 0
        %1078 = vmatpush1.bf16.xpose.msra.mxu0 0
        %1079 = vmatprep.subr.bf16.mxu0 0
        %1080 = vmatpush1.bf16.xpose.msra.mxu0 0
        %1081 = vmatprep.subr.bf16.mxu0 0
        %1082 = vmatpush1.bf16.xpose.msra.mxu0 0
        %1083 = vmatprep.subr.bf16.mxu0 0
        %1084 = vmatpush1.bf16.xpose.msra.mxu0 0
        %1085 = vmatprep.subr.bf16.mxu0 0
        %1086 = vmatpush1.bf16.xpose.msra.mxu0 0
        %1087 = vmatprep.subr.bf16.mxu0 0
        %1088 = vmatpush1.bf16.xpose.msra.mxu0 0
        %1089 = vmatprep.subr.bf16.mxu0 0
        %1090 = vmatpush1.bf16.xpose.msra.mxu0 0
        %1091 = vmatprep.subr.bf16.mxu0 0
        %1092 = vmatpush1.bf16.xpose.msra.mxu0 0
        %1093 = vmatprep.mubr.bf16.mxu0 0
        %1094 = vmatmul.mubr.bf16.gmra.mrb[0].mxu0 %v1056
        %v1095 = vpop.f32.mrb[0].mxu0
        %v1096 = vadd.f32 0.0, %v1095
        %v1097 = vpop.f32.mrb[0].mxu0
        %v1098 = vpop.f32.mrb[0].mxu0
        %v1099 = vpop.f32.mrb[0].mxu0
        %1100 = vdwg.mxu0
        %1102 = vrot.lane.b32.xlu0 %v757, 120
        %v1103 = vpop.permute.xlu0 %1102
        %v1105 = vsel %vm668, %v757, 0
        %v1108 = vsel %vm668, %v1103, 0
        %1110 = vmatprep.subr.bf16.mxu0 0
        %1111 = vmatpush1.bf16.xpose.msra.mxu0 %v1108
        %1112 = vmatprep.subr.bf16.mxu0 0
        %1113 = vmatpush1.bf16.xpose.msra.mxu0 0
        %1114 = vmatprep.subr.bf16.mxu0 0
        %1115 = vmatpush1.bf16.xpose.msra.mxu0 0
        %1116 = vmatprep.subr.bf16.mxu0 0
        %1117 = vmatpush1.bf16.xpose.msra.mxu0 0
        %1118 = vmatprep.subr.bf16.mxu0 0
        %1119 = vmatpush1.bf16.xpose.msra.mxu0 0
        %1120 = vmatprep.subr.bf16.mxu0 0
        %1121 = vmatpush1.bf16.xpose.msra.mxu0 0
        %1122 = vmatprep.subr.bf16.mxu0 0
        %1123 = vmatpush1.bf16.xpose.msra.mxu0 0
        %1124 = vmatprep.subr.bf16.mxu0 0
        %1125 = vmatpush1.bf16.xpose.msra.mxu0 0
        %1126 = vmatprep.subr.bf16.mxu0 0
        %1127 = vmatpush1.bf16.xpose.msra.mxu0 0
        %1128 = vmatprep.subr.bf16.mxu0 0
        %1129 = vmatpush1.bf16.xpose.msra.mxu0 0
        %1130 = vmatprep.subr.bf16.mxu0 0
        %1131 = vmatpush1.bf16.xpose.msra.mxu0 0
        %1132 = vmatprep.subr.bf16.mxu0 0
        %1133 = vmatpush1.bf16.xpose.msra.mxu0 0
        %1134 = vmatprep.subr.bf16.mxu0 0
        %1135 = vmatpush1.bf16.xpose.msra.mxu0 0
        %1136 = vmatprep.subr.bf16.mxu0 0
        %1137 = vmatpush1.bf16.xpose.msra.mxu0 0
        %1138 = vmatprep.subr.bf16.mxu0 0
        %1139 = vmatpush1.bf16.xpose.msra.mxu0 0
        %1140 = vmatprep.subr.bf16.mxu0 0
        %1141 = vmatpush1.bf16.xpose.msra.mxu0 0
        %1142 = vmatprep.mubr.bf16.mxu0 0
        %1143 = vmatmul.mubr.bf16.gmra.mrb[0].mxu0 %v1105
        %v1144 = vpop.f32.mrb[0].mxu0
        %v1145 = vadd.f32 0.0, %v1144
        %v1146 = vpop.f32.mrb[0].mxu0
        %v1147 = vpop.f32.mrb[0].mxu0
        %v1148 = vpop.f32.mrb[0].mxu0
        %1149 = vdwg.mxu0
        %v1150 = vsel %vm668, %v802, -inf
        %1151 = vmax.xlane.f32.xlu0 %v1150
        %v1152 = vpop.xlane.xlu0 %1151
        %v1153 = vsel %vm668, %v851, -inf
        %1154 = vmax.xlane.f32.xlu0 %v1153
        %v1155 = vpop.xlane.xlu0 %1154
        %v1156 = vsel %vm668, %v900, -inf
        %1157 = vmax.xlane.f32.xlu0 %v1156
        %v1158 = vpop.xlane.xlu0 %1157
        %v1159 = vsel %vm668, %v949, -inf
        %1160 = vmax.xlane.f32.xlu0 %v1159
        %v1161 = vpop.xlane.xlu0 %1160
        %v1162 = vsel %vm668, %v998, -inf
        %1163 = vmax.xlane.f32.xlu0 %v1162
        %v1164 = vpop.xlane.xlu0 %1163
        %v1165 = vsel %vm668, %v1047, -inf
        %1166 = vmax.xlane.f32.xlu0 %v1165
        %v1167 = vpop.xlane.xlu0 %1166
        %v1168 = vsel %vm668, %v1096, -inf
        %1169 = vmax.xlane.f32.xlu0 %v1168
        %v1170 = vpop.xlane.xlu0 %1169
        %v1171 = vsel %vm668, %v1145, -inf
        %1172 = vmax.xlane.f32.xlu0 %v1171
        %v1173 = vpop.xlane.xlu0 %1172
        %v1174 = vsub.f32 %v802, %v1152
        %v1175 = vsub.f32 %v851, %v1155
        %v1176 = vsub.f32 %v900, %v1158
        %v1177 = vsub.f32 %v949, %v1161
        %v1178 = vsub.f32 %v998, %v1164
        %v1179 = vsub.f32 %v1047, %v1167
        %v1180 = vsub.f32 %v1096, %v1170
        %v1181 = vsub.f32 %v1145, %v1173
        %v1182 = vmul.f32 %v1174, 1.442695
        %v1183 = vpow.pop %v1182
        %v1184 = vmul.f32 %v1175, 1.442695
        %v1185 = vpow.pop %v1184
        %v1186 = vmul.f32 %v1176, 1.442695
        %v1187 = vpow.pop %v1186
        %v1188 = vmul.f32 %v1177, 1.442695
        %v1189 = vpow.pop %v1188
        %v1190 = vmul.f32 %v1178, 1.442695
        %v1191 = vpow.pop %v1190
        %v1192 = vmul.f32 %v1179, 1.442695
        %v1193 = vpow.pop %v1192
        %v1194 = vmul.f32 %v1180, 1.442695
        %v1195 = vpow.pop %v1194
        %v1196 = vmul.f32 %v1181, 1.442695
        %v1197 = vpow.pop %v1196
        %v1198 = vsel %vm668, %v1183, 0.0
        %1199 = vadd.xlane.f32.xlu0 %v1198
        %v1200 = vpop.xlane.xlu0 %1199
        %v1201 = vsel %vm668, %v1185, 0.0
        %1202 = vadd.xlane.f32.xlu0 %v1201
        %v1203 = vpop.xlane.xlu0 %1202
        %v1204 = vsel %vm668, %v1187, 0.0
        %1205 = vadd.xlane.f32.xlu0 %v1204
        %v1206 = vpop.xlane.xlu0 %1205
        %v1207 = vsel %vm668, %v1189, 0.0
        %1208 = vadd.xlane.f32.xlu0 %v1207
        %v1209 = vpop.xlane.xlu0 %1208
        %v1210 = vsel %vm668, %v1191, 0.0
        %1211 = vadd.xlane.f32.xlu0 %v1210
        %v1212 = vpop.xlane.xlu0 %1211
        %v1213 = vsel %vm668, %v1193, 0.0
        %1214 = vadd.xlane.f32.xlu0 %v1213
        %v1215 = vpop.xlane.xlu0 %1214
        %v1216 = vsel %vm668, %v1195, 0.0
        %1217 = vadd.xlane.f32.xlu0 %v1216
        %v1218 = vpop.xlane.xlu0 %1217
        %v1219 = vsel %vm668, %v1197, 0.0
        %1220 = vadd.xlane.f32.xlu0 %v1219
        %v1221 = vpop.xlane.xlu0 %1220
        %v1222 = vrcp.pop %v1200
        %v1223 = vrcp.pop %v1203
        %v1224 = vrcp.pop %v1206
        %v1225 = vrcp.pop %v1209
        %v1226 = vrcp.pop %v1212
        %v1227 = vrcp.pop %v1215
        %v1228 = vrcp.pop %v1218
        %v1229 = vrcp.pop %v1221
        %v1230 = vmul.f32 %v1183, %v1222
        %v1231 = vmul.f32 %v1185, %v1223
        %v1232 = vmul.f32 %v1187, %v1224
        %v1233 = vmul.f32 %v1189, %v1225
        %v1234 = vmul.f32 %v1191, %v1226
        %v1235 = vmul.f32 %v1193, %v1227
        %v1236 = vmul.f32 %v1195, %v1228
        %v1237 = vmul.f32 %v1197, %v1229
        %v1238 = vpack.c.bf16 %v1230, %v1230
        %v1239 = vpack.c.bf16 %v1231, %v1231
        %v1240 = vpack.c.bf16 %v1232, %v1232
        %v1241 = vpack.c.bf16 %v1233, %v1233
        %v1242 = vpack.c.bf16 %v1234, %v1234
        %v1243 = vpack.c.bf16 %v1235, %v1235
        %v1244 = vpack.c.bf16 %v1236, %v1236
        %v1245 = vpack.c.bf16 %v1237, %v1237
        %1246 = vrot.lane.b32.xlu0 %v750, 112
        %v1247 = vpop.permute.xlu0 %1246
        %v1249 = vsel %vm668, %v1238, 0
        %v1252 = vsel %vm681, %v1247, 0
        %1254 = vmatprep.subr.bf16.mxu0 0
        %1255 = vmatpush1.bf16.msra.mxu0 %v1252
        %1256 = vmatprep.subr.bf16.mxu0 0
        %1257 = vmatpush1.bf16.msra.mxu0 0
        %1258 = vmatprep.subr.bf16.mxu0 0
        %1259 = vmatpush1.bf16.msra.mxu0 0
        %1260 = vmatprep.subr.bf16.mxu0 0
        %1261 = vmatpush1.bf16.msra.mxu0 0
        %1262 = vmatprep.subr.bf16.mxu0 0
        %1263 = vmatpush1.bf16.msra.mxu0 0
        %1264 = vmatprep.subr.bf16.mxu0 0
        %1265 = vmatpush1.bf16.msra.mxu0 0
        %1266 = vmatprep.subr.bf16.mxu0 0
        %1267 = vmatpush1.bf16.msra.mxu0 0
        %1268 = vmatprep.subr.bf16.mxu0 0
        %1269 = vmatpush1.bf16.msra.mxu0 0
        %1270 = vmatprep.subr.bf16.mxu0 0
        %1271 = vmatpush1.bf16.msra.mxu0 0
        %1272 = vmatprep.subr.bf16.mxu0 0
        %1273 = vmatpush1.bf16.msra.mxu0 0
        %1274 = vmatprep.subr.bf16.mxu0 0
        %1275 = vmatpush1.bf16.msra.mxu0 0
        %1276 = vmatprep.subr.bf16.mxu0 0
        %1277 = vmatpush1.bf16.msra.mxu0 0
        %1278 = vmatprep.subr.bf16.mxu0 0
        %1279 = vmatpush1.bf16.msra.mxu0 0
        %1280 = vmatprep.subr.bf16.mxu0 0
        %1281 = vmatpush1.bf16.msra.mxu0 0
        %1282 = vmatprep.subr.bf16.mxu0 0
        %1283 = vmatpush1.bf16.msra.mxu0 0
        %1284 = vmatprep.subr.bf16.mxu0 0
        %1285 = vmatpush1.bf16.msra.mxu0 0
        %1286 = vmatprep.mubr.bf16.mxu0 0
        %1287 = vmatmul.mubr.bf16.gmra.mrb[0].mxu0 %v1249
        %v1288 = vpop.f32.mrb[0].mxu0
        %v1289 = vadd.f32 0.0, %v1288
        %v1290 = vpop.f32.mrb[0].mxu0
        %v1291 = vpop.f32.mrb[0].mxu0
        %v1292 = vpop.f32.mrb[0].mxu0
        %1293 = vdwg.mxu0
        %1294 = vrot.lane.b32.xlu0 %v751, 112
        %v1295 = vpop.permute.xlu0 %1294
        %v1297 = vsel %vm668, %v1239, 0
        %v1300 = vsel %vm681, %v1295, 0
        %1302 = vmatprep.subr.bf16.mxu0 0
        %1303 = vmatpush1.bf16.msra.mxu0 %v1300
        %1304 = vmatprep.subr.bf16.mxu0 0
        %1305 = vmatpush1.bf16.msra.mxu0 0
        %1306 = vmatprep.subr.bf16.mxu0 0
        %1307 = vmatpush1.bf16.msra.mxu0 0
        %1308 = vmatprep.subr.bf16.mxu0 0
        %1309 = vmatpush1.bf16.msra.mxu0 0
        %1310 = vmatprep.subr.bf16.mxu0 0
        %1311 = vmatpush1.bf16.msra.mxu0 0
        %1312 = vmatprep.subr.bf16.mxu0 0
        %1313 = vmatpush1.bf16.msra.mxu0 0
        %1314 = vmatprep.subr.bf16.mxu0 0
        %1315 = vmatpush1.bf16.msra.mxu0 0
        %1316 = vmatprep.subr.bf16.mxu0 0
        %1317 = vmatpush1.bf16.msra.mxu0 0
        %1318 = vmatprep.subr.bf16.mxu0 0
        %1319 = vmatpush1.bf16.msra.mxu0 0
        %1320 = vmatprep.subr.bf16.mxu0 0
        %1321 = vmatpush1.bf16.msra.mxu0 0
        %1322 = vmatprep.subr.bf16.mxu0 0
        %1323 = vmatpush1.bf16.msra.mxu0 0
        %1324 = vmatprep.subr.bf16.mxu0 0
        %1325 = vmatpush1.bf16.msra.mxu0 0
        %1326 = vmatprep.subr.bf16.mxu0 0
        %1327 = vmatpush1.bf16.msra.mxu0 0
        %1328 = vmatprep.subr.bf16.mxu0 0
        %1329 = vmatpush1.bf16.msra.mxu0 0
        %1330 = vmatprep.subr.bf16.mxu0 0
        %1331 = vmatpush1.bf16.msra.mxu0 0
        %1332 = vmatprep.subr.bf16.mxu0 0
        %1333 = vmatpush1.bf16.msra.mxu0 0
        %1334 = vmatprep.mubr.bf16.mxu0 0
        %1335 = vmatmul.mubr.bf16.gmra.mrb[0].mxu0 %v1297
        %v1336 = vpop.f32.mrb[0].mxu0
        %v1337 = vadd.f32 0.0, %v1336
        %v1338 = vpop.f32.mrb[0].mxu0
        %v1339 = vpop.f32.mrb[0].mxu0
        %v1340 = vpop.f32.mrb[0].mxu0
        %1341 = vdwg.mxu0
        %1342 = vrot.lane.b32.xlu0 %v752, 112
        %v1343 = vpop.permute.xlu0 %1342
        %v1345 = vsel %vm668, %v1240, 0
        %v1348 = vsel %vm681, %v1343, 0
        %1350 = vmatprep.subr.bf16.mxu0 0
        %1351 = vmatpush1.bf16.msra.mxu0 %v1348
        %1352 = vmatprep.subr.bf16.mxu0 0
        %1353 = vmatpush1.bf16.msra.mxu0 0
        %1354 = vmatprep.subr.bf16.mxu0 0
        %1355 = vmatpush1.bf16.msra.mxu0 0
        %1356 = vmatprep.subr.bf16.mxu0 0
        %1357 = vmatpush1.bf16.msra.mxu0 0
        %1358 = vmatprep.subr.bf16.mxu0 0
        %1359 = vmatpush1.bf16.msra.mxu0 0
        %1360 = vmatprep.subr.bf16.mxu0 0
        %1361 = vmatpush1.bf16.msra.mxu0 0
        %1362 = vmatprep.subr.bf16.mxu0 0
        %1363 = vmatpush1.bf16.msra.mxu0 0
        %1364 = vmatprep.subr.bf16.mxu0 0
        %1365 = vmatpush1.bf16.msra.mxu0 0
        %1366 = vmatprep.subr.bf16.mxu0 0
        %1367 = vmatpush1.bf16.msra.mxu0 0
        %1368 = vmatprep.subr.bf16.mxu0 0
        %1369 = vmatpush1.bf16.msra.mxu0 0
        %1370 = vmatprep.subr.bf16.mxu0 0
        %1371 = vmatpush1.bf16.msra.mxu0 0
        %1372 = vmatprep.subr.bf16.mxu0 0
        %1373 = vmatpush1.bf16.msra.mxu0 0
        %1374 = vmatprep.subr.bf16.mxu0 0
        %1375 = vmatpush1.bf16.msra.mxu0 0
        %1376 = vmatprep.subr.bf16.mxu0 0
        %1377 = vmatpush1.bf16.msra.mxu0 0
        %1378 = vmatprep.subr.bf16.mxu0 0
        %1379 = vmatpush1.bf16.msra.mxu0 0
        %1380 = vmatprep.subr.bf16.mxu0 0
        %1381 = vmatpush1.bf16.msra.mxu0 0
        %1382 = vmatprep.mubr.bf16.mxu0 0
        %1383 = vmatmul.mubr.bf16.gmra.mrb[0].mxu0 %v1345
        %v1384 = vpop.f32.mrb[0].mxu0
        %v1385 = vadd.f32 0.0, %v1384
        %v1386 = vpop.f32.mrb[0].mxu0
        %v1387 = vpop.f32.mrb[0].mxu0
        %v1388 = vpop.f32.mrb[0].mxu0
        %1389 = vdwg.mxu0
        %1390 = vrot.lane.b32.xlu0 %v753, 112
        %v1391 = vpop.permute.xlu0 %1390
        %v1393 = vsel %vm668, %v1241, 0
        %v1396 = vsel %vm681, %v1391, 0
        %1398 = vmatprep.subr.bf16.mxu0 0
        %1399 = vmatpush1.bf16.msra.mxu0 %v1396
        %1400 = vmatprep.subr.bf16.mxu0 0
        %1401 = vmatpush1.bf16.msra.mxu0 0
        %1402 = vmatprep.subr.bf16.mxu0 0
        %1403 = vmatpush1.bf16.msra.mxu0 0
        %1404 = vmatprep.subr.bf16.mxu0 0
        %1405 = vmatpush1.bf16.msra.mxu0 0
        %1406 = vmatprep.subr.bf16.mxu0 0
        %1407 = vmatpush1.bf16.msra.mxu0 0
        %1408 = vmatprep.subr.bf16.mxu0 0
        %1409 = vmatpush1.bf16.msra.mxu0 0
        %1410 = vmatprep.subr.bf16.mxu0 0
        %1411 = vmatpush1.bf16.msra.mxu0 0
        %1412 = vmatprep.subr.bf16.mxu0 0
        %1413 = vmatpush1.bf16.msra.mxu0 0
        %1414 = vmatprep.subr.bf16.mxu0 0
        %1415 = vmatpush1.bf16.msra.mxu0 0
        %1416 = vmatprep.subr.bf16.mxu0 0
        %1417 = vmatpush1.bf16.msra.mxu0 0
        %1418 = vmatprep.subr.bf16.mxu0 0
        %1419 = vmatpush1.bf16.msra.mxu0 0
        %1420 = vmatprep.subr.bf16.mxu0 0
        %1421 = vmatpush1.bf16.msra.mxu0 0
        %1422 = vmatprep.subr.bf16.mxu0 0
        %1423 = vmatpush1.bf16.msra.mxu0 0
        %1424 = vmatprep.subr.bf16.mxu0 0
        %1425 = vmatpush1.bf16.msra.mxu0 0
        %1426 = vmatprep.subr.bf16.mxu0 0
        %1427 = vmatpush1.bf16.msra.mxu0 0
        %1428 = vmatprep.subr.bf16.mxu0 0
        %1429 = vmatpush1.bf16.msra.mxu0 0
        %1430 = vmatprep.mubr.bf16.mxu0 0
        %1431 = vmatmul.mubr.bf16.gmra.mrb[0].mxu0 %v1393
        %v1432 = vpop.f32.mrb[0].mxu0
        %v1433 = vadd.f32 0.0, %v1432
        %v1434 = vpop.f32.mrb[0].mxu0
        %v1435 = vpop.f32.mrb[0].mxu0
        %v1436 = vpop.f32.mrb[0].mxu0
        %1437 = vdwg.mxu0
        %1438 = vrot.lane.b32.xlu0 %v754, 112
        %v1439 = vpop.permute.xlu0 %1438
        %v1441 = vsel %vm668, %v1242, 0
        %v1444 = vsel %vm681, %v1439, 0
        %1446 = vmatprep.subr.bf16.mxu0 0
        %1447 = vmatpush1.bf16.msra.mxu0 %v1444
        %1448 = vmatprep.subr.bf16.mxu0 0
        %1449 = vmatpush1.bf16.msra.mxu0 0
        %1450 = vmatprep.subr.bf16.mxu0 0
        %1451 = vmatpush1.bf16.msra.mxu0 0
        %1452 = vmatprep.subr.bf16.mxu0 0
        %1453 = vmatpush1.bf16.msra.mxu0 0
        %1454 = vmatprep.subr.bf16.mxu0 0
        %1455 = vmatpush1.bf16.msra.mxu0 0
        %1456 = vmatprep.subr.bf16.mxu0 0
        %1457 = vmatpush1.bf16.msra.mxu0 0
        %1458 = vmatprep.subr.bf16.mxu0 0
        %1459 = vmatpush1.bf16.msra.mxu0 0
        %1460 = vmatprep.subr.bf16.mxu0 0
        %1461 = vmatpush1.bf16.msra.mxu0 0
        %1462 = vmatprep.subr.bf16.mxu0 0
        %1463 = vmatpush1.bf16.msra.mxu0 0
        %1464 = vmatprep.subr.bf16.mxu0 0
        %1465 = vmatpush1.bf16.msra.mxu0 0
        %1466 = vmatprep.subr.bf16.mxu0 0
        %1467 = vmatpush1.bf16.msra.mxu0 0
        %1468 = vmatprep.subr.bf16.mxu0 0
        %1469 = vmatpush1.bf16.msra.mxu0 0
        %1470 = vmatprep.subr.bf16.mxu0 0
        %1471 = vmatpush1.bf16.msra.mxu0 0
        %1472 = vmatprep.subr.bf16.mxu0 0
        %1473 = vmatpush1.bf16.msra.mxu0 0
        %1474 = vmatprep.subr.bf16.mxu0 0
        %1475 = vmatpush1.bf16.msra.mxu0 0
        %1476 = vmatprep.subr.bf16.mxu0 0
        %1477 = vmatpush1.bf16.msra.mxu0 0
        %1478 = vmatprep.mubr.bf16.mxu0 0
        %1479 = vmatmul.mubr.bf16.gmra.mrb[0].mxu0 %v1441
        %v1480 = vpop.f32.mrb[0].mxu0
        %v1481 = vadd.f32 0.0, %v1480
        %v1482 = vpop.f32.mrb[0].mxu0
        %v1483 = vpop.f32.mrb[0].mxu0
        %v1484 = vpop.f32.mrb[0].mxu0
        %1485 = vdwg.mxu0
        %1486 = vrot.lane.b32.xlu0 %v755, 112
        %v1487 = vpop.permute.xlu0 %1486
        %v1489 = vsel %vm668, %v1243, 0
        %v1492 = vsel %vm681, %v1487, 0
        %1494 = vmatprep.subr.bf16.mxu0 0
        %1495 = vmatpush1.bf16.msra.mxu0 %v1492
        %1496 = vmatprep.subr.bf16.mxu0 0
        %1497 = vmatpush1.bf16.msra.mxu0 0
        %1498 = vmatprep.subr.bf16.mxu0 0
        %1499 = vmatpush1.bf16.msra.mxu0 0
        %1500 = vmatprep.subr.bf16.mxu0 0
        %1501 = vmatpush1.bf16.msra.mxu0 0
        %1502 = vmatprep.subr.bf16.mxu0 0
        %1503 = vmatpush1.bf16.msra.mxu0 0
        %1504 = vmatprep.subr.bf16.mxu0 0
        %1505 = vmatpush1.bf16.msra.mxu0 0
        %1506 = vmatprep.subr.bf16.mxu0 0
        %1507 = vmatpush1.bf16.msra.mxu0 0
        %1508 = vmatprep.subr.bf16.mxu0 0
        %1509 = vmatpush1.bf16.msra.mxu0 0
        %1510 = vmatprep.subr.bf16.mxu0 0
        %1511 = vmatpush1.bf16.msra.mxu0 0
        %1512 = vmatprep.subr.bf16.mxu0 0
        %1513 = vmatpush1.bf16.msra.mxu0 0
        %1514 = vmatprep.subr.bf16.mxu0 0
        %1515 = vmatpush1.bf16.msra.mxu0 0
        %1516 = vmatprep.subr.bf16.mxu0 0
        %1517 = vmatpush1.bf16.msra.mxu0 0
        %1518 = vmatprep.subr.bf16.mxu0 0
        %1519 = vmatpush1.bf16.msra.mxu0 0
        %1520 = vmatprep.subr.bf16.mxu0 0
        %1521 = vmatpush1.bf16.msra.mxu0 0
        %1522 = vmatprep.subr.bf16.mxu0 0
        %1523 = vmatpush1.bf16.msra.mxu0 0
        %1524 = vmatprep.subr.bf16.mxu0 0
        %1525 = vmatpush1.bf16.msra.mxu0 0
        %1526 = vmatprep.mubr.bf16.mxu0 0
        %1527 = vmatmul.mubr.bf16.gmra.mrb[0].mxu0 %v1489
        %v1528 = vpop.f32.mrb[0].mxu0
        %v1529 = vadd.f32 0.0, %v1528
        %v1530 = vpop.f32.mrb[0].mxu0
        %v1531 = vpop.f32.mrb[0].mxu0
        %v1532 = vpop.f32.mrb[0].mxu0
        %1533 = vdwg.mxu0
        %1534 = vrot.lane.b32.xlu0 %v756, 112
        %v1535 = vpop.permute.xlu0 %1534
        %v1537 = vsel %vm668, %v1244, 0
        %v1540 = vsel %vm681, %v1535, 0
        %1542 = vmatprep.subr.bf16.mxu0 0
        %1543 = vmatpush1.bf16.msra.mxu0 %v1540
        %1544 = vmatprep.subr.bf16.mxu0 0
        %1545 = vmatpush1.bf16.msra.mxu0 0
        %1546 = vmatprep.subr.bf16.mxu0 0
        %1547 = vmatpush1.bf16.msra.mxu0 0
        %1548 = vmatprep.subr.bf16.mxu0 0
        %1549 = vmatpush1.bf16.msra.mxu0 0
        %1550 = vmatprep.subr.bf16.mxu0 0
        %1551 = vmatpush1.bf16.msra.mxu0 0
        %1552 = vmatprep.subr.bf16.mxu0 0
        %1553 = vmatpush1.bf16.msra.mxu0 0
        %1554 = vmatprep.subr.bf16.mxu0 0
        %1555 = vmatpush1.bf16.msra.mxu0 0
        %1556 = vmatprep.subr.bf16.mxu0 0
        %1557 = vmatpush1.bf16.msra.mxu0 0
        %1558 = vmatprep.subr.bf16.mxu0 0
        %1559 = vmatpush1.bf16.msra.mxu0 0
        %1560 = vmatprep.subr.bf16.mxu0 0
        %1561 = vmatpush1.bf16.msra.mxu0 0
        %1562 = vmatprep.subr.bf16.mxu0 0
        %1563 = vmatpush1.bf16.msra.mxu0 0
        %1564 = vmatprep.subr.bf16.mxu0 0
        %1565 = vmatpush1.bf16.msra.mxu0 0
        %1566 = vmatprep.subr.bf16.mxu0 0
        %1567 = vmatpush1.bf16.msra.mxu0 0
        %1568 = vmatprep.subr.bf16.mxu0 0
        %1569 = vmatpush1.bf16.msra.mxu0 0
        %1570 = vmatprep.subr.bf16.mxu0 0
        %1571 = vmatpush1.bf16.msra.mxu0 0
        %1572 = vmatprep.subr.bf16.mxu0 0
        %1573 = vmatpush1.bf16.msra.mxu0 0
        %1574 = vmatprep.mubr.bf16.mxu0 0
        %1575 = vmatmul.mubr.bf16.gmra.mrb[0].mxu0 %v1537
        %v1576 = vpop.f32.mrb[0].mxu0
        %v1577 = vadd.f32 0.0, %v1576
        %v1578 = vpop.f32.mrb[0].mxu0
        %v1579 = vpop.f32.mrb[0].mxu0
        %v1580 = vpop.f32.mrb[0].mxu0
        %1581 = vdwg.mxu0
        %1582 = vrot.lane.b32.xlu0 %v757, 112
        %v1583 = vpop.permute.xlu0 %1582
        %v1585 = vsel %vm668, %v1245, 0
        %v1588 = vsel %vm681, %v1583, 0
        %1590 = vmatprep.subr.bf16.mxu0 0
        %1591 = vmatpush1.bf16.msra.mxu0 %v1588
        %1592 = vmatprep.subr.bf16.mxu0 0
        %1593 = vmatpush1.bf16.msra.mxu0 0
        %1594 = vmatprep.subr.bf16.mxu0 0
        %1595 = vmatpush1.bf16.msra.mxu0 0
        %1596 = vmatprep.subr.bf16.mxu0 0
        %1597 = vmatpush1.bf16.msra.mxu0 0
        %1598 = vmatprep.subr.bf16.mxu0 0
        %1599 = vmatpush1.bf16.msra.mxu0 0
        %1600 = vmatprep.subr.bf16.mxu0 0
        %1601 = vmatpush1.bf16.msra.mxu0 0
        %1602 = vmatprep.subr.bf16.mxu0 0
        %1603 = vmatpush1.bf16.msra.mxu0 0
        %1604 = vmatprep.subr.bf16.mxu0 0
        %1605 = vmatpush1.bf16.msra.mxu0 0
        %1606 = vmatprep.subr.bf16.mxu0 0
        %1607 = vmatpush1.bf16.msra.mxu0 0
        %1608 = vmatprep.subr.bf16.mxu0 0
        %1609 = vmatpush1.bf16.msra.mxu0 0
        %1610 = vmatprep.subr.bf16.mxu0 0
        %1611 = vmatpush1.bf16.msra.mxu0 0
        %1612 = vmatprep.subr.bf16.mxu0 0
        %1613 = vmatpush1.bf16.msra.mxu0 0
        %1614 = vmatprep.subr.bf16.mxu0 0
        %1615 = vmatpush1.bf16.msra.mxu0 0
        %1616 = vmatprep.subr.bf16.mxu0 0
        %1617 = vmatpush1.bf16.msra.mxu0 0
        %1618 = vmatprep.subr.bf16.mxu0 0
        %1619 = vmatpush1.bf16.msra.mxu0 0
        %1620 = vmatprep.subr.bf16.mxu0 0
        %1621 = vmatpush1.bf16.msra.mxu0 0
        %1622 = vmatprep.mubr.bf16.mxu0 0
        %1623 = vmatmul.mubr.bf16.gmra.mrb[0].mxu0 %v1585
        %v1624 = vpop.f32.mrb[0].mxu0
        %v1625 = vadd.f32 0.0, %v1624
        %v1626 = vpop.f32.mrb[0].mxu0
        %v1627 = vpop.f32.mrb[0].mxu0
        %v1628 = vpop.f32.mrb[0].mxu0
        %1629 = vdwg.mxu0
        %1632 = vrot.lane.b32.xlu0 %v1385, 8
        %v1633 = vpop.permute.xlu0 %1632
        %1634 = vrot.lane.b32.xlu0 %v1433, 8
        %v1635 = vpop.permute.xlu0 %1634
        %1640 = vrot.lane.b32.xlu0 %v1481, 16
        %v1641 = vpop.permute.xlu0 %1640
        %1642 = vrot.lane.b32.xlu0 %v1529, 16
        %v1643 = vpop.permute.xlu0 %1642
        %1648 = vrot.lane.b32.xlu0 %v1577, 24
        %v1649 = vpop.permute.xlu0 %1648
        %1650 = vrot.lane.b32.xlu0 %v1625, 24
        %v1651 = vpop.permute.xlu0 %1650
        %v1654 = vsel %vm668, %v1289, %v1633
        %v1655 = vsel %vm668, %v1337, %v1635
        %vm1656 = vcmask 130048
        %v1657 = vsel %vm1656, %v1654, %v1641
        %v1658 = vsel %vm1656, %v1655, %v1643
        %vm1659 = vcmask 195584
        %v1660 = vsel %vm1659, %v1657, %v1649
        %v1661 = vsel %vm1659, %v1658, %v1651
        %v1662 = vpack.c.bf16 %v1661, %v1660
        %v1663 = vld [vmem:[%s589] sm:$0xf]
        %v1664 = vld [vmem:[%s589 + $0x4] sm:$0xf]
        %v1665 = vld [vmem:[%s589 + $0x8] sm:$0xf]
        %v1666 = vld [vmem:[%s589 + $0xc] sm:$0xf]
        %v1667 = vld [vmem:[%s592] sm:$0x1]
        %v1669 = vlaneseq
        %v1670 = vshrl.u32 %v1669, 7
        %v1671 = vsub.s32 0, %v1670
        %v1672 = vrot.slane %v1667, %v1671
        %v1678 = vunpack.c.l.b16 %v1663
        %v1679 = vunpack.c.l.b16 %v1664
        %v1680 = vunpack.c.l.b16 %v1665
        %v1681 = vunpack.c.l.b16 %v1666
        %v1682 = vpack.c.b16 %v1679, %v1678
        %v1683 = vpack.c.b16 %v1681, %v1680
        %vm1686 = vcmask 261120
        %v1688 = vsel %vm1686, %v1662, 0
        %1690 = vmatprep.subr.bf16.mxu0 0
        %1691 = vmatpush1.bf16.msra.mxu0 %v1682
        %1692 = vmatprep.subr.bf16.mxu0 0
        %1693 = vmatpush1.bf16.msra.mxu0 %v1683
        %1694 = vmatprep.subr.bf16.mxu0 0
        %1695 = vmatpush1.bf16.msra.mxu0 0
        %1696 = vmatprep.subr.bf16.mxu0 0
        %1697 = vmatpush1.bf16.msra.mxu0 0
        %1698 = vmatprep.subr.bf16.mxu0 0
        %1699 = vmatpush1.bf16.msra.mxu0 0
        %1700 = vmatprep.subr.bf16.mxu0 0
        %1701 = vmatpush1.bf16.msra.mxu0 0
        %1702 = vmatprep.subr.bf16.mxu0 0
        %1703 = vmatpush1.bf16.msra.mxu0 0
        %1704 = vmatprep.subr.bf16.mxu0 0
        %1705 = vmatpush1.bf16.msra.mxu0 0
        %1706 = vmatprep.subr.bf16.mxu0 0
        %1707 = vmatpush1.bf16.msra.mxu0 0
        %1708 = vmatprep.subr.bf16.mxu0 0
        %1709 = vmatpush1.bf16.msra.mxu0 0
        %1710 = vmatprep.subr.bf16.mxu0 0
        %1711 = vmatpush1.bf16.msra.mxu0 0
        %1712 = vmatprep.subr.bf16.mxu0 0
        %1713 = vmatpush1.bf16.msra.mxu0 0
        %1714 = vmatprep.subr.bf16.mxu0 0
        %1715 = vmatpush1.bf16.msra.mxu0 0
        %1716 = vmatprep.subr.bf16.mxu0 0
        %1717 = vmatpush1.bf16.msra.mxu0 0
        %1718 = vmatprep.subr.bf16.mxu0 0
        %1719 = vmatpush1.bf16.msra.mxu0 0
        %1720 = vmatprep.subr.bf16.mxu0 0
        %1721 = vmatpush1.bf16.msra.mxu0 0
        %1722 = vmatprep.mubr.bf16.mxu0 0
        %1723 = vmatmul.mubr.bf16.gmra.mrb[0].mxu0 %v1688
        %v1724 = vpop.f32.mrb[0].mxu0
        %v1725 = vadd.f32 %v1672, %v1724
        %v1726 = vpop.f32.mrb[0].mxu0
        %v1727 = vpop.f32.mrb[0].mxu0
        %v1728 = vadd.f32 %v1672, %v1727
        %v1729 = vpop.f32.mrb[0].mxu0
        %1730 = vdwg.mxu0
        %v1731 = vadd.f32 %v1725, %v641
        %v1732 = vadd.f32 %v1728, %v642
        %v1733 = vld [vmem:[%s595] sm:$0x1]
        %v1734 = vld [vmem:[%s598] sm:$0x1]
        %v1735 = vsel %vm1686, %v1731, 0.0
        %1736 = vadd.xlane.f32.xlu0 %v1735
        %v1737 = vpop.xlane.xlu0 %1736
        %v1738 = vsel %vm1686, %v1732, 0.0
        %1739 = vadd.xlane.f32.xlu0 %v1738
        %v1740 = vpop.xlane.xlu0 %1739
        %v1741 = vrcp.pop 32.0
        %v1742 = vmul.f32 %v1737, %v1741
        %v1743 = vmul.f32 %v1740, %v1741
        %v1744 = vsub.f32 %v1731, %v1742
        %v1745 = vsub.f32 %v1732, %v1743
        %v1746 = vmul.f32 %v1744, %v1744
        %v1747 = vmul.f32 %v1745, %v1745
        %v1748 = vsel %vm1686, %v1746, 0.0
        %1749 = vadd.xlane.f32.xlu0 %v1748
        %v1750 = vpop.xlane.xlu0 %1749
        %v1751 = vsel %vm1686, %v1747, 0.0
        %1752 = vadd.xlane.f32.xlu0 %v1751
        %v1753 = vpop.xlane.xlu0 %1752
        %v1754 = vmul.f32 %v1750, %v1741
        %v1755 = vmul.f32 %v1753, %v1741
        %v1756 = vadd.f32 %v1754, 1e-05
        %v1757 = vadd.f32 %v1755, 1e-05
        %v1758 = vrsqrt.pop %v1756
        %v1759 = vrsqrt.pop %v1757
        %v1760 = vmul.f32 %v1744, %v1758
        %v1761 = vmul.f32 %v1745, %v1759
        %v1763 = vlaneseq
        %v1764 = vshrl.u32 %v1763, 7
        %v1765 = vsub.s32 0, %v1764
        %v1766 = vrot.slane %v1733, %v1765
        %v1768 = vmul.f32 %v1760, %v1766
        %v1769 = vmul.f32 %v1761, %v1766
        %v1771 = vlaneseq
        %v1772 = vshrl.u32 %v1771, 7
        %v1773 = vsub.s32 0, %v1772
        %v1774 = vrot.slane %v1734, %v1773
        %v1776 = vadd.f32 %v1768, %v1774
        %v1777 = vadd.f32 %v1769, %v1774
        %v1778 = vpack.c.bf16 %v1777, %v1776
        %v1779 = vld [vmem:[%s603] sm:$0xf]
        %v1780 = vld [vmem:[%s603 + $0x4] sm:$0xf]
        %v1781 = vld [vmem:[%s603 + $0x8] sm:$0xf]
        %v1782 = vld [vmem:[%s603 + $0xc] sm:$0xf]
        %v1783 = vld [vmem:[%s606] sm:$0x1]
        %v1785 = vlaneseq
        %v1786 = vshrl.u32 %v1785, 7
        %v1787 = vsub.s32 0, %v1786
        %v1788 = vrot.slane %v1783, %v1787
        %v1794 = vunpack.c.l.b16 %v1779
        %v1795 = vunpack.c.l.b16 %v1780
        %v1796 = vunpack.c.l.b16 %v1781
        %v1797 = vunpack.c.l.b16 %v1782
        %v1798 = vpack.c.b16 %v1795, %v1794
        %v1799 = vpack.c.b16 %v1797, %v1796
        %v1803 = vsel %vm1686, %v1778, 0
        %1805 = vmatprep.subr.bf16.mxu0 0
        %1806 = vmatpush1.bf16.msra.mxu0 %v1798
        %1807 = vmatprep.subr.bf16.mxu0 0
        %1808 = vmatpush1.bf16.msra.mxu0 %v1799
        %1809 = vmatprep.subr.bf16.mxu0 0
        %1810 = vmatpush1.bf16.msra.mxu0 0
        %1811 = vmatprep.subr.bf16.mxu0 0
        %1812 = vmatpush1.bf16.msra.mxu0 0
        %1813 = vmatprep.subr.bf16.mxu0 0
        %1814 = vmatpush1.bf16.msra.mxu0 0
        %1815 = vmatprep.subr.bf16.mxu0 0
        %1816 = vmatpush1.bf16.msra.mxu0 0
        %1817 = vmatprep.subr.bf16.mxu0 0
        %1818 = vmatpush1.bf16.msra.mxu0 0
        %1819 = vmatprep.subr.bf16.mxu0 0
        %1820 = vmatpush1.bf16.msra.mxu0 0
        %1821 = vmatprep.subr.bf16.mxu0 0
        %1822 = vmatpush1.bf16.msra.mxu0 0
        %1823 = vmatprep.subr.bf16.mxu0 0
        %1824 = vmatpush1.bf16.msra.mxu0 0
        %1825 = vmatprep.subr.bf16.mxu0 0
        %1826 = vmatpush1.bf16.msra.mxu0 0
        %1827 = vmatprep.subr.bf16.mxu0 0
        %1828 = vmatpush1.bf16.msra.mxu0 0
        %1829 = vmatprep.subr.bf16.mxu0 0
        %1830 = vmatpush1.bf16.msra.mxu0 0
        %1831 = vmatprep.subr.bf16.mxu0 0
        %1832 = vmatpush1.bf16.msra.mxu0 0
        %1833 = vmatprep.subr.bf16.mxu0 0
        %1834 = vmatpush1.bf16.msra.mxu0 0
        %1835 = vmatprep.subr.bf16.mxu0 0
        %1836 = vmatpush1.bf16.msra.mxu0 0
        %1837 = vmatprep.mubr.bf16.mxu0 0
        %1838 = vmatmul.mubr.bf16.gmra.mrb[0].mxu0 %v1803
        %v1839 = vpop.f32.mrb[0].mxu0
        %v1840 = vadd.f32 %v1788, %v1839
        %v1841 = vpop.f32.mrb[0].mxu0
        %v1842 = vpop.f32.mrb[0].mxu0
        %v1843 = vadd.f32 %v1788, %v1842
        %v1844 = vpop.f32.mrb[0].mxu0
        %1845 = vdwg.mxu0
        %v1846 = vmax.f32 %v1840, 0.0
        %v1847 = vmax.f32 %v1843, 0.0
        %v1848 = vpack.c.bf16 %v1847, %v1846
        %v1849 = vld [vmem:[%s611] sm:$0xf]
        %v1850 = vld [vmem:[%s611 + $0x4] sm:$0xf]
        %v1851 = vld [vmem:[%s611 + $0x8] sm:$0xf]
        %v1852 = vld [vmem:[%s611 + $0xc] sm:$0xf]
        %v1853 = vld [vmem:[%s611 + $0x10] sm:$0xf]
        %v1854 = vld [vmem:[%s611 + $0x14] sm:$0xf]
        %v1855 = vld [vmem:[%s611 + $0x18] sm:$0xf]
        %v1856 = vld [vmem:[%s611 + $0x1c] sm:$0xf]
        %v1857 = vld [vmem:[%s611 + $0x20] sm:$0xf]
        %v1858 = vld [vmem:[%s611 + $0x24] sm:$0xf]
        %v1859 = vld [vmem:[%s611 + $0x28] sm:$0xf]
        %v1860 = vld [vmem:[%s611 + $0x2c] sm:$0xf]
        %v1861 = vld [vmem:[%s611 + $0x30] sm:$0xf]
        %v1862 = vld [vmem:[%s611 + $0x34] sm:$0xf]
        %v1863 = vld [vmem:[%s611 + $0x38] sm:$0xf]
        %v1864 = vld [vmem:[%s611 + $0x3c] sm:$0xf]
        %v1865 = vld [vmem:[%s614] sm:$0x1]
        %v1867 = vlaneseq
        %v1868 = vshrl.u32 %v1867, 7
        %v1869 = vsub.s32 0, %v1868
        %v1870 = vrot.slane %v1865, %v1869
        %v1888 = vunpack.c.l.b16 %v1849
        %v1889 = vunpack.c.l.b16 %v1850
        %v1890 = vunpack.c.l.b16 %v1851
        %v1891 = vunpack.c.l.b16 %v1852
        %v1892 = vunpack.c.l.b16 %v1853
        %v1893 = vunpack.c.l.b16 %v1854
        %v1894 = vunpack.c.l.b16 %v1855
        %v1895 = vunpack.c.l.b16 %v1856
        %v1896 = vunpack.c.l.b16 %v1857
        %v1897 = vunpack.c.l.b16 %v1858
        %v1898 = vunpack.c.l.b16 %v1859
        %v1899 = vunpack.c.l.b16 %v1860
        %v1900 = vunpack.c.l.b16 %v1861
        %v1901 = vunpack.c.l.b16 %v1862
        %v1902 = vunpack.c.l.b16 %v1863
        %v1903 = vunpack.c.l.b16 %v1864
        %v1904 = vpack.c.b16 %v1889, %v1888
        %v1905 = vpack.c.b16 %v1891, %v1890
        %v1906 = vpack.c.b16 %v1893, %v1892
        %v1907 = vpack.c.b16 %v1895, %v1894
        %v1908 = vpack.c.b16 %v1897, %v1896
        %v1909 = vpack.c.b16 %v1899, %v1898
        %v1910 = vpack.c.b16 %v1901, %v1900
        %v1911 = vpack.c.b16 %v1903, %v1902
        %1920 = vmatprep.subr.bf16.mxu0 0
        %1921 = vmatpush1.bf16.msra.mxu0 %v1904
        %1922 = vmatprep.subr.bf16.mxu0 0
        %1923 = vmatpush1.bf16.msra.mxu0 %v1905
        %1924 = vmatprep.subr.bf16.mxu0 0
        %1925 = vmatpush1.bf16.msra.mxu0 %v1906
        %1926 = vmatprep.subr.bf16.mxu0 0
        %1927 = vmatpush1.bf16.msra.mxu0 %v1907
        %1928 = vmatprep.subr.bf16.mxu0 0
        %1929 = vmatpush1.bf16.msra.mxu0 %v1908
        %1930 = vmatprep.subr.bf16.mxu0 0
        %1931 = vmatpush1.bf16.msra.mxu0 %v1909
        %1932 = vmatprep.subr.bf16.mxu0 0
        %1933 = vmatpush1.bf16.msra.mxu0 %v1910
        %1934 = vmatprep.subr.bf16.mxu0 0
        %1935 = vmatpush1.bf16.msra.mxu0 %v1911
        %1936 = vmatprep.subr.bf16.mxu0 0
        %1937 = vmatpush1.bf16.msra.mxu0 0
        %1938 = vmatprep.subr.bf16.mxu0 0
        %1939 = vmatpush1.bf16.msra.mxu0 0
        %1940 = vmatprep.subr.bf16.mxu0 0
        %1941 = vmatpush1.bf16.msra.mxu0 0
        %1942 = vmatprep.subr.bf16.mxu0 0
        %1943 = vmatpush1.bf16.msra.mxu0 0
        %1944 = vmatprep.subr.bf16.mxu0 0
        %1945 = vmatpush1.bf16.msra.mxu0 0
        %1946 = vmatprep.subr.bf16.mxu0 0
        %1947 = vmatpush1.bf16.msra.mxu0 0
        %1948 = vmatprep.subr.bf16.mxu0 0
        %1949 = vmatpush1.bf16.msra.mxu0 0
        %1950 = vmatprep.subr.bf16.mxu0 0
        %1951 = vmatpush1.bf16.msra.mxu0 0
        %1952 = vmatprep.mubr.bf16.mxu0 0
        %1953 = vmatmul.mubr.bf16.gmra.mrb[0].mxu0 %v1848
        %v1954 = vpop.f32.mrb[0].mxu0
        %v1955 = vadd.f32 %v1870, %v1954
        %v1956 = vpop.f32.mrb[0].mxu0
        %v1957 = vpop.f32.mrb[0].mxu0
        %v1958 = vadd.f32 %v1870, %v1957
        %v1959 = vpop.f32.mrb[0].mxu0
        %1960 = vdwg.mxu0
        %v1961 = vadd.f32 %v1955, %v1776
        %v1962 = vadd.f32 %v1958, %v1777
        %v1963 = vld [vmem:[%s617] sm:$0x1]
        %v1964 = vld [vmem:[%s620] sm:$0x1]
        %v1965 = vsel %vm1686, %v1961, 0.0
        %1966 = vadd.xlane.f32.xlu0 %v1965
        %v1967 = vpop.xlane.xlu0 %1966
        %v1968 = vsel %vm1686, %v1962, 0.0
        %1969 = vadd.xlane.f32.xlu0 %v1968
        %v1970 = vpop.xlane.xlu0 %1969
        %v1971 = vmul.f32 %v1967, %v1741
        %v1972 = vmul.f32 %v1970, %v1741
        %v1973 = vsub.f32 %v1961, %v1971
        %v1974 = vsub.f32 %v1962, %v1972
        %v1975 = vmul.f32 %v1973, %v1973
        %v1976 = vmul.f32 %v1974, %v1974
        %v1977 = vsel %vm1686, %v1975, 0.0
        %1978 = vadd.xlane.f32.xlu0 %v1977
        %v1979 = vpop.xlane.xlu0 %1978
        %v1980 = vsel %vm1686, %v1976, 0.0
        %1981 = vadd.xlane.f32.xlu0 %v1980
        %v1982 = vpop.xlane.xlu0 %1981
        %v1983 = vmul.f32 %v1979, %v1741
        %v1984 = vmul.f32 %v1982, %v1741
        %v1985 = vadd.f32 %v1983, 1e-05
        %v1986 = vadd.f32 %v1984, 1e-05
        %v1987 = vrsqrt.pop %v1985
        %v1988 = vrsqrt.pop %v1986
        %v1989 = vmul.f32 %v1973, %v1987
        %v1990 = vmul.f32 %v1974, %v1988
        %v1992 = vlaneseq
        %v1993 = vshrl.u32 %v1992, 7
        %v1994 = vsub.s32 0, %v1993
        %v1995 = vrot.slane %v1963, %v1994
        %v1997 = vmul.f32 %v1989, %v1995
        %v1998 = vmul.f32 %v1990, %v1995
        %v2000 = vlaneseq
        %v2001 = vshrl.u32 %v2000, 7
        %v2002 = vsub.s32 0, %v2001
        %v2003 = vrot.slane %v1964, %v2002
        %v2005 = vadd.f32 %v1997, %v2003
        %v2006 = vadd.f32 %v1998, %v2003
        %2007 = vst.msk [vmem:[#allocation2] sm:$0xff] %vm1686, %v2005
        %2008 = vst.msk [vmem:[#allocation2 + $0x8] sm:$0xff] %vm1686, %v2006
        // Predicated region
        $region77: #{tpu_custom_call.1} parent=71 // pred_check
          %p2009 = pneg %p388
        $region78: #{tpu_custom_call.1} parent=71 // pred_check_branch
          %2011 = sbr.rel (%p2009) target = $region80
        $region79: #{tpu_custom_call.1} parent=71 // pred_region
          %s2012 = smul.u32 2, %s29
          %s2014 = ssub.s32 256, 256
          %2015 = vsyncadd [#allocation3], %s2014
          %s2016 = smul.addr %s2012, 128
          %s2017 = scalar_lea.hbm %s13, %s2016
          %s2018 = sshll.u32 [#allocation2], 4
          %s2019 = int_to_ptr.vmem [resolvable:$true] %s2018
          %2024 = dma.vmem_to_hbm [thread:$0]  %s2019, 256, %s2017, [#allocation3], 128, 128, 8
        $region80: #{tpu_custom_call.1} parent=71 // pred_fallthru
          _
        // Predicated region
        $region81: #{tpu_custom_call.1} parent=71 // pred_check
          %p2025 = pneg %p388
        $region82: #{tpu_custom_call.1} parent=71 // pred_check_branch
          %2027 = sbr.rel (%p2025) target = $region84
        $region83: #{tpu_custom_call.1} parent=71 // pred_region
          %2028 = dma.done [#allocation3], 256
        $region84: #{tpu_custom_call.1} parent=71 // pred_fallthru
          _
      $region72: #{tpu_custom_call.1} parent=5 // pred_fallthru
        _
      %p2029 = scmp.le.s32.totalorder 2, %s20
      // Predicated region
      $region85: #{tpu_custom_call.1} parent=5 // pred_check
        %p2030 = pneg %p2029
      $region86: #{tpu_custom_call.1} parent=5 // pred_check_branch
        %2032 = sbr.rel (%p2030) target = $region88
      $region87: #{tpu_custom_call.1} parent=5 // pred_region
        %s2033 = ssub.s32 %s20, 2
      $region88: #{tpu_custom_call.1} parent=5 // pred_fallthru
        _
    $region6: #{tpu_custom_call.1} parent=1 // loop_footer
      %s24 = sadd.s32 1, %s20
    $region7: #{tpu_custom_call.1} parent=1 // loop_footer_branch
      %19 = sbr.rel target = $region3
    $region8: #{tpu_custom_call.1} parent=1 // loop_exit
      _
    %2034 = vsyncpa [#allocation3], 1
    %s2035 = scalar_lea.sflag [#allocation3], 1
    %2036 = vsyncpa %s2035, 1

</llo_original>
